<compile_context>
chip_gen: v6e
topology: v6e:2x2x1
jax: 0.10.0
libtpu: 0.0.40
codegen_flags: <defaults>
</compile_context>

<pallas_src>
import functools

import jax
import jax.numpy as jnp
from jax import lax
from jax.experimental import pallas as pl
from jax.experimental.pallas import tpu as pltpu


# ------------------------------ fused Pallas kernel ------------------------------

def _fused_kernel(x_ref, m_ref, w1_ref, wrb1_ref, w2_ref, wrb2_ref, w3_ref,
                  o_ref, *, shifts):
    """All 11 convs (conv + folded BN (+ReLU)) for a slab of whole batch elements.

    x_ref   : (Cin_pad, N)          activations, lane-dense (channel, batch*H*W)
    m_ref   : (9, N)                0/1 border masks for the 9 conv taps (f32)
    w1_ref  : (C2, 9*Cin_pad + 1)   conv1  weight, BN scale folded, bias last col
    wrb1_ref: (4, C2, 9*C2 + 1)     ResBlock_1's four convs
    w2_ref  : (C4, 9*C2 + 1)        conv2
    wrb2_ref: (4, C4, 9*C4 + 1)     ResBlock_2's four convs
    w3_ref  : (Cout, 9*C4 + 1)      conv3 (no BN: scale=1, bias=0)
    o_ref   : (Cout, N)
    """
    n = x_ref.shape[-1]
    masks = m_ref[...]                                   # loaded once
    mask_rows = [masks[k:k + 1, :] for k in range(9)]    # hoisted (1, N) rows
    ones_row = jnp.ones((1, n), jnp.float32)             # bias row, hoisted

    def conv(f, w, relu):
        # Build the (9*Cin + 1, N) im2col slab with exact XLU rolls + border masks,
        # then ONE fat MXU matmul per layer (bias folded in via the ones row).
        cols = []
        for k in range(9):
            s = shifts[k]
            if s == 0:
                cols.append(f)                           # centre tap, mask == 1
            else:
                cols.append(pltpu.roll(f, s, axis=1) * mask_rows[k])
        cols.append(ones_row)
        col = jnp.concatenate(cols, axis=0)              # (9*Cin + 1, N)
        y = jnp.dot(w, col, preferred_element_type=jnp.float32)
        return jnp.maximum(y, 0.0) if relu else y

    f = conv(x_ref[...], w1_ref[...], True)              # conv1 -> bn1 -> relu
    for i in (0, 2):                                     # ResBlock_1 (two blocks)
        h = conv(f, wrb1_ref[i], True)
        f = conv(h, wrb1_ref[i + 1], False) + f
    f = conv(f, w2_ref[...], True)                       # conv2 -> bn2 -> relu
    for i in (0, 2):                                     # ResBlock_2 (two blocks)
        h = conv(f, wrb2_ref[i], True)
        f = conv(h, wrb2_ref[i + 1], False) + f
    o_ref[...] = conv(f, w3_ref[...], False)             # conv3 (no BN / no relu)


# ------------------------------- wrapper / plumbing -------------------------------

def _tap_shifts(W, n):
    """Lane-roll amounts so roll(f, s)[c, i] == f[c, (i + dh*W + dw) mod n]."""
    shifts = []
    for kh in range(3):
        for kw in range(3):
            off = (kh - 1) * W + (kw - 1)
            shifts.append((-off) % n)
    return tuple(shifts)


def _tap_masks(H, W, reps):
    """(9, reps*H*W) 0/1 masks: 1 where tap (kh, kw) stays inside the image."""
    HW = H * W
    idx = jnp.arange(HW)
    h, w = idx // W, idx % W
    rows = []
    for kh in range(3):
        for kw in range(3):
            dh, dw = kh - 1, kw - 1
            valid = (h + dh >= 0) & (h + dh < H) & (w + dw >= 0) & (w + dw < W)
            rows.append(valid.astype(jnp.float32))
    return jnp.tile(jnp.stack(rows), (1, reps))


def _fold_weight(w_hwio, scale, bias, cin_pad=None):
    """(3,3,Cin,Cout) HWIO conv weight + BN scale/bias -> (Cout, 9*Cin(_pad) + 1)."""
    k1, k2, cin, cout = w_hwio.shape
    if cin_pad is not None and cin_pad != cin:
        w_hwio = jnp.concatenate(
            [w_hwio, jnp.zeros((k1, k2, cin_pad - cin, cout), w_hwio.dtype)], axis=2)
        cin = cin_pad
    wp = jnp.transpose(w_hwio, (3, 0, 1, 2)).reshape(cout, 9 * cin) * scale[:, None]
    return jnp.concatenate([wp, bias[:, None]], axis=1).astype(jnp.float32)


def _pack_weights(params, cin0_pad):
    w1 = _fold_weight(*params["conv1"], cin_pad=cin0_pad)
    rb1 = []
    for name in ("rb1a", "rb1b"):
        a1, s1, b1, a2, s2, b2 = params[name]
        rb1 += [_fold_weight(a1, s1, b1), _fold_weight(a2, s2, b2)]
    w2 = _fold_weight(*params["conv2"])
    rb2 = []
    for name in ("rb2a", "rb2b"):
        a1, s1, b1, a2, s2, b2 = params[name]
        rb2 += [_fold_weight(a1, s1, b1), _fold_weight(a2, s2, b2)]
    w3_raw = params["conv3"]
    cout = w3_raw.shape[-1]
    w3 = _fold_weight(w3_raw, jnp.ones((cout,), jnp.float32),
                      jnp.zeros((cout,), jnp.float32))
    return w1, jnp.stack(rb1), w2, jnp.stack(rb2), w3


def pallas_forward(x_nchw, params):
    """x_nchw: (B, input_days, H, W) -> (B, output_days, H, W), matching PyTorch."""
    B, cin0, H, W = x_nchw.shape
    HW = H * W
    ntotal = B * HW
    # Two "parallel" grid steps (one per v7x TensorCore) when the batch splits
    # cleanly into lane-dense halves; otherwise one step (minimal fixed per-step
    # overhead on single-core v5e / v6e).
    G = 2 if (B >= 2 and B % 2 == 0 and ((B // 2) * HW) % 128 == 0) else 1
    bpg = B // G
    nstep = bpg * HW

    cin_pad = ((cin0 + 7) // 8) * 8
    x_flat = jnp.transpose(x_nchw, (1, 0, 2, 3)).reshape(cin0, ntotal).astype(jnp.float32)
    if cin_pad != cin0:
        x_flat = jnp.concatenate(
            [x_flat, jnp.zeros((cin_pad - cin0, ntotal), jnp.float32)], axis=0)

    masks = _tap_masks(H, W, bpg)                        # (9, nstep)
    shifts = _tap_shifts(W, nstep)
    w1, wrb1, w2, wrb2, w3 = _pack_weights(params, cin_pad)
    cout_last = w3.shape[0]

    kernel = functools.partial(_fused_kernel, shifts=shifts)
    out = pl.pallas_call(
        kernel,
        out_shape=jax.ShapeDtypeStruct((cout_last, ntotal), jnp.float32),
        grid=(G,),
        in_specs=[
            pl.BlockSpec((cin_pad, nstep), lambda g: (0, g)),
            pl.BlockSpec((9, nstep), lambda g: (0, 0)),
            pl.BlockSpec(w1.shape, lambda g: (0, 0)),
            pl.BlockSpec(wrb1.shape, lambda g: (0, 0, 0)),
            pl.BlockSpec(w2.shape, lambda g: (0, 0)),
            pl.BlockSpec(wrb2.shape, lambda g: (0, 0, 0)),
            pl.BlockSpec(w3.shape, lambda g: (0, 0)),
        ],
        out_specs=pl.BlockSpec((cout_last, nstep), lambda g: (0, g)),
        compiler_params=pltpu.CompilerParams(dimension_semantics=("parallel",)),
    )(x_flat, masks, w1, wrb1, w2, wrb2, w3)

    return jnp.transpose(out.reshape(cout_last, B, H, W), (1, 0, 2, 3))


# ----------------------------- reference (plain XLA) ------------------------------

def _ref_conv3x3(x, w4, scale, bias, residual=None, relu=False):
    y = lax.conv_general_dilated(
        x, w4, window_strides=(1, 1), padding="SAME",
        dimension_numbers=("NHWC", "HWIO", "NHWC"),
        precision=lax.Precision.HIGHEST)
    y = y * scale.reshape(1, 1, 1, -1) + bias.reshape(1, 1, 1, -1)
    if residual is not None:
        y = y + residual
    if relu:
        y = jnp.maximum(y, 0.0)
    return y


def ref_forward(x_nchw, params):
    f = jnp.transpose(x_nchw, (0, 2, 3, 1))                    # NCHW -> NHWC
    w, s, b = params["conv1"]
    f = _ref_conv3x3(f, w, s, b, None, True)
    for name in ("rb1a", "rb1b"):
        w1, s1, b1, w2, s2, b2 = params[name]
        h = _ref_conv3x3(f, w1, s1, b1, None, True)
        f = _ref_conv3x3(h, w2, s2, b2, f, False)
    w, s, b = params["conv2"]
    f = _ref_conv3x3(f, w, s, b, None, True)
    for name in ("rb2a", "rb2b"):
        w1, s1, b1, w2, s2, b2 = params[name]
        h = _ref_conv3x3(f, w1, s1, b1, None, True)
        f = _ref_conv3x3(h, w2, s2, b2, f, False)
    w3 = params["conv3"]
    cout = w3.shape[-1]
    f = _ref_conv3x3(f, w3, jnp.ones((cout,), jnp.float32),
                     jnp.zeros((cout,), jnp.float32), None, False)
    return jnp.transpose(f, (0, 3, 1, 2))                      # NHWC -> NCHW


# ---------------------------- deterministic parameters ----------------------------

def _init_conv(key, cin, cout):
    return (0.05 * jax.random.normal(key, (3, 3, cin, cout))).astype(jnp.float32)


def _init_bn(key, c, eps=1e-5):
    k1, k2, k3, k4 = jax.random.split(key, 4)
    gamma = 1.0 + 0.1 * jax.random.normal(k1, (c,))
    beta = 0.1 * jax.random.normal(k2, (c,))
    mean = 0.1 * jax.random.normal(k3, (c,))
    var = 1.0 + 0.1 * jax.random.uniform(k4, (c,))
    scale = gamma / jnp.sqrt(var + eps)
    bias = beta - mean * scale
    return scale.astype(jnp.float32), bias.astype(jnp.float32)


def init_params(key, input_days, conv_channel, output_days):
    c2, c4 = conv_channel * 2, conv_channel * 4
    keys = iter(jax.random.split(key, 64))

    def conv_bn(cin, cout):
        w = _init_conv(next(keys), cin, cout)
        s, b = _init_bn(next(keys), cout)
        return w, s, b

    def resblock(c):
        w1, s1, b1 = conv_bn(c, c)
        w2, s2, b2 = conv_bn(c, c)
        return (w1, s1, b1, w2, s2, b2)

    return {
        "conv1": conv_bn(input_days, c2),
        "rb1a": resblock(c2),
        "rb1b": resblock(c2),
        "conv2": conv_bn(c2, c4),
        "rb2a": resblock(c4),
        "rb2b": resblock(c4),
        "conv3": _init_conv(next(keys), c4, output_days),
    }


# ----------------------------------------- main -----------------------------------------

if __name__ == "__main__":
    # Hyper-parameters (get_parameters() stand-ins), small shapes.
    conv_channel = 4
    input_days = 4
    output_days = 4
    B, H, W = 2, 16, 16

    key = jax.random.PRNGKey(0)
    k_x, k_p = jax.random.split(key)
    x = jax.random.normal(k_x, (B, input_days, H, W), jnp.float32)   # NCHW like PyTorch
    params = init_params(k_p, input_days, conv_channel, output_days)

    pallas_model = jax.jit(lambda xx: pallas_forward(xx, params))
    ref_model = jax.jit(lambda xx: ref_forward(xx, params))

    out = jax.block_until_ready(pallas_model(x))
    ref = jax.block_until_ready(ref_model(x))

    assert out.shape == (B, output_days, H, W), out.shape
    assert bool(jnp.all(jnp.isfinite(out)))
    max_err = float(jnp.max(jnp.abs(out - ref)))
    rel_err = float(jnp.linalg.norm(out - ref) / (jnp.linalg.norm(ref) + 1e-12))
    # Kernel matmuls use default (bf16-pass) MXU precision; reference is HIGHEST-precision f32.
    assert max_err < 5e-2 and rel_err < 2e-2, (max_err, rel_err)

    print("KERNEL_OK")
</pallas_src>

<mosaic_0001>
module attributes {stable_mosaic.version = 11 : i64} {
  func.func @_fused_kernel(%arg0: i32, %arg1: memref<8x256xf32, #tpu.memory_space<vmem>>, %arg2: memref<9x256xf32, #tpu.memory_space<vmem>>, %arg3: memref<8x73xf32, #tpu.memory_space<vmem>>, %arg4: memref<4x8x73xf32, #tpu.memory_space<vmem>>, %arg5: memref<16x73xf32, #tpu.memory_space<vmem>>, %arg6: memref<4x16x145xf32, #tpu.memory_space<vmem>>, %arg7: memref<4x145xf32, #tpu.memory_space<vmem>>, %arg8: memref<4x256xf32, #tpu.memory_space<vmem>>) attributes {dimension_semantics = [#tpu.dimension_semantics<parallel>], iteration_bounds = array<i64: 2>, scalar_prefetch = 0 : i64, scratch_operands = 0 : i64, tpu.core_type = #tpu.core_type<tc>, window_params = [{transform_indices = @transform_0, window_bounds = array<i64: 8, 256>}, {pipeline_mode = #tpu.pipeline_mode<synchronous>, transform_indices = @transform_1, window_bounds = array<i64: 9, 256>}, {pipeline_mode = #tpu.pipeline_mode<synchronous>, transform_indices = @transform_2, window_bounds = array<i64: 8, 73>}, {pipeline_mode = #tpu.pipeline_mode<synchronous>, transform_indices = @transform_3, window_bounds = array<i64: 4, 8, 73>}, {pipeline_mode = #tpu.pipeline_mode<synchronous>, transform_indices = @transform_4, window_bounds = array<i64: 16, 73>}, {pipeline_mode = #tpu.pipeline_mode<synchronous>, transform_indices = @transform_5, window_bounds = array<i64: 4, 16, 145>}, {pipeline_mode = #tpu.pipeline_mode<synchronous>, transform_indices = @transform_6, window_bounds = array<i64: 4, 145>}, {transform_indices = @transform_7, window_bounds = array<i64: 4, 256>}]} {
    %c0 = arith.constant 0 : index
    %c0_0 = arith.constant 0 : index
    %0 = vector.load %arg2[%c0, %c0_0] : memref<9x256xf32, #tpu.memory_space<vmem>>, vector<9x256xf32>
    %1 = vector.extract_strided_slice %0 {offsets = [0, 0], sizes = [1, 256], strides = [1, 1]} : vector<9x256xf32> to vector<1x256xf32>
    %2 = vector.extract_strided_slice %0 {offsets = [1, 0], sizes = [1, 256], strides = [1, 1]} : vector<9x256xf32> to vector<1x256xf32>
    %3 = vector.extract_strided_slice %0 {offsets = [2, 0], sizes = [1, 256], strides = [1, 1]} : vector<9x256xf32> to vector<1x256xf32>
    %4 = vector.extract_strided_slice %0 {offsets = [3, 0], sizes = [1, 256], strides = [1, 1]} : vector<9x256xf32> to vector<1x256xf32>
    %5 = vector.extract_strided_slice %0 {offsets = [5, 0], sizes = [1, 256], strides = [1, 1]} : vector<9x256xf32> to vector<1x256xf32>
    %6 = vector.extract_strided_slice %0 {offsets = [6, 0], sizes = [1, 256], strides = [1, 1]} : vector<9x256xf32> to vector<1x256xf32>
    %7 = vector.extract_strided_slice %0 {offsets = [7, 0], sizes = [1, 256], strides = [1, 1]} : vector<9x256xf32> to vector<1x256xf32>
    %8 = vector.extract_strided_slice %0 {offsets = [8, 0], sizes = [1, 256], strides = [1, 1]} : vector<9x256xf32> to vector<1x256xf32>
    %cst = arith.constant 1.000000e+00 : f32
    %9 = vector.broadcast %cst : f32 to vector<1x256xf32>
    %c0_1 = arith.constant 0 : index
    %c0_2 = arith.constant 0 : index
    %10 = vector.load %arg1[%c0_1, %c0_2] : memref<8x256xf32, #tpu.memory_space<vmem>>, vector<8x256xf32>
    %c0_3 = arith.constant 0 : index
    %c0_4 = arith.constant 0 : index
    %11 = vector.load %arg3[%c0_3, %c0_4] : memref<8x73xf32, #tpu.memory_space<vmem>>, vector<8x73xf32>
    %c17_i32 = arith.constant 17 : i32
    %12 = tpu.dynamic_rotate %10 by %c17_i32 dim 1 : vector<8x256xf32>, i32 -> vector<8x256xf32>
    %13 = vector.broadcast %1 : vector<1x256xf32> to vector<8x256xf32>
    %14 = arith.mulf %12, %13 : vector<8x256xf32>
    %c16_i32 = arith.constant 16 : i32
    %15 = tpu.dynamic_rotate %10 by %c16_i32 dim 1 : vector<8x256xf32>, i32 -> vector<8x256xf32>
    %16 = vector.broadcast %2 : vector<1x256xf32> to vector<8x256xf32>
    %17 = arith.mulf %15, %16 : vector<8x256xf32>
    %c15_i32 = arith.constant 15 : i32
    %18 = tpu.dynamic_rotate %10 by %c15_i32 dim 1 : vector<8x256xf32>, i32 -> vector<8x256xf32>
    %19 = vector.broadcast %3 : vector<1x256xf32> to vector<8x256xf32>
    %20 = arith.mulf %18, %19 : vector<8x256xf32>
    %c1_i32 = arith.constant 1 : i32
    %21 = tpu.dynamic_rotate %10 by %c1_i32 dim 1 : vector<8x256xf32>, i32 -> vector<8x256xf32>
    %22 = vector.broadcast %4 : vector<1x256xf32> to vector<8x256xf32>
    %23 = arith.mulf %21, %22 : vector<8x256xf32>
    %c255_i32 = arith.constant 255 : i32
    %24 = tpu.dynamic_rotate %10 by %c255_i32 dim 1 : vector<8x256xf32>, i32 -> vector<8x256xf32>
    %25 = vector.broadcast %5 : vector<1x256xf32> to vector<8x256xf32>
    %26 = arith.mulf %24, %25 : vector<8x256xf32>
    %c241_i32 = arith.constant 241 : i32
    %27 = tpu.dynamic_rotate %10 by %c241_i32 dim 1 : vector<8x256xf32>, i32 -> vector<8x256xf32>
    %28 = vector.broadcast %6 : vector<1x256xf32> to vector<8x256xf32>
    %29 = arith.mulf %27, %28 : vector<8x256xf32>
    %c240_i32 = arith.constant 240 : i32
    %30 = tpu.dynamic_rotate %10 by %c240_i32 dim 1 : vector<8x256xf32>, i32 -> vector<8x256xf32>
    %31 = vector.broadcast %7 : vector<1x256xf32> to vector<8x256xf32>
    %32 = arith.mulf %30, %31 : vector<8x256xf32>
    %c239_i32 = arith.constant 239 : i32
    %33 = tpu.dynamic_rotate %10 by %c239_i32 dim 1 : vector<8x256xf32>, i32 -> vector<8x256xf32>
    %34 = vector.broadcast %8 : vector<1x256xf32> to vector<8x256xf32>
    %35 = arith.mulf %33, %34 : vector<8x256xf32>
    %36 = tpu.concatenate %14, %17, %20, %23, %10, %26, %29, %32, %35, %9 in 0 : vector<8x256xf32>, vector<8x256xf32>, vector<8x256xf32>, vector<8x256xf32>, vector<8x256xf32>, vector<8x256xf32>, vector<8x256xf32>, vector<8x256xf32>, vector<8x256xf32>, vector<1x256xf32> -> vector<73x256xf32>
    %cst_5 = arith.constant dense<0.000000e+00> : vector<8x256xf32>
    %37 = tpu.matmul %11, %36, %cst_5 {dimension_numbers = #tpu.dot_dimension_numbers<[1], [0], [0], [1], [0, 0, 1, 1], [], []>} : vector<8x73xf32>, vector<73x256xf32>, vector<8x256xf32> -> vector<8x256xf32>
    %cst_6 = arith.constant 0.000000e+00 : f32
    %38 = vector.broadcast %cst_6 : f32 to vector<8x256xf32>
    %39 = arith.maximumf %37, %38 : vector<8x256xf32>
    %c0_7 = arith.constant 0 : index
    %c0_8 = arith.constant 0 : index
    %c0_9 = arith.constant 0 : index
    %40 = vector.load %arg4[%c0_7, %c0_8, %c0_9] : memref<4x8x73xf32, #tpu.memory_space<vmem>>, vector<1x8x73xf32>
    %41 = vector.shape_cast %40 : vector<1x8x73xf32> to vector<8x73xf32>
    %c17_i32_10 = arith.constant 17 : i32
    %42 = tpu.dynamic_rotate %39 by %c17_i32_10 dim 1 : vector<8x256xf32>, i32 -> vector<8x256xf32>
    %43 = vector.broadcast %1 : vector<1x256xf32> to vector<8x256xf32>
    %44 = arith.mulf %42, %43 : vector<8x256xf32>
    %c16_i32_11 = arith.constant 16 : i32
    %45 = tpu.dynamic_rotate %39 by %c16_i32_11 dim 1 : vector<8x256xf32>, i32 -> vector<8x256xf32>
    %46 = vector.broadcast %2 : vector<1x256xf32> to vector<8x256xf32>
    %47 = arith.mulf %45, %46 : vector<8x256xf32>
    %c15_i32_12 = arith.constant 15 : i32
    %48 = tpu.dynamic_rotate %39 by %c15_i32_12 dim 1 : vector<8x256xf32>, i32 -> vector<8x256xf32>
    %49 = vector.broadcast %3 : vector<1x256xf32> to vector<8x256xf32>
    %50 = arith.mulf %48, %49 : vector<8x256xf32>
    %c1_i32_13 = arith.constant 1 : i32
    %51 = tpu.dynamic_rotate %39 by %c1_i32_13 dim 1 : vector<8x256xf32>, i32 -> vector<8x256xf32>
    %52 = vector.broadcast %4 : vector<1x256xf32> to vector<8x256xf32>
    %53 = arith.mulf %51, %52 : vector<8x256xf32>
    %c255_i32_14 = arith.constant 255 : i32
    %54 = tpu.dynamic_rotate %39 by %c255_i32_14 dim 1 : vector<8x256xf32>, i32 -> vector<8x256xf32>
    %55 = vector.broadcast %5 : vector<1x256xf32> to vector<8x256xf32>
    %56 = arith.mulf %54, %55 : vector<8x256xf32>
    %c241_i32_15 = arith.constant 241 : i32
    %57 = tpu.dynamic_rotate %39 by %c241_i32_15 dim 1 : vector<8x256xf32>, i32 -> vector<8x256xf32>
    %58 = vector.broadcast %6 : vector<1x256xf32> to vector<8x256xf32>
    %59 = arith.mulf %57, %58 : vector<8x256xf32>
    %c240_i32_16 = arith.constant 240 : i32
    %60 = tpu.dynamic_rotate %39 by %c240_i32_16 dim 1 : vector<8x256xf32>, i32 -> vector<8x256xf32>
    %61 = vector.broadcast %7 : vector<1x256xf32> to vector<8x256xf32>
    %62 = arith.mulf %60, %61 : vector<8x256xf32>
    %c239_i32_17 = arith.constant 239 : i32
    %63 = tpu.dynamic_rotate %39 by %c239_i32_17 dim 1 : vector<8x256xf32>, i32 -> vector<8x256xf32>
    %64 = vector.broadcast %8 : vector<1x256xf32> to vector<8x256xf32>
    %65 = arith.mulf %63, %64 : vector<8x256xf32>
    %66 = tpu.concatenate %44, %47, %50, %53, %39, %56, %59, %62, %65, %9 in 0 : vector<8x256xf32>, vector<8x256xf32>, vector<8x256xf32>, vector<8x256xf32>, vector<8x256xf32>, vector<8x256xf32>, vector<8x256xf32>, vector<8x256xf32>, vector<8x256xf32>, vector<1x256xf32> -> vector<73x256xf32>
    %cst_18 = arith.constant dense<0.000000e+00> : vector<8x256xf32>
    %67 = tpu.matmul %41, %66, %cst_18 {dimension_numbers = #tpu.dot_dimension_numbers<[1], [0], [0], [1], [0, 0, 1, 1], [], []>} : vector<8x73xf32>, vector<73x256xf32>, vector<8x256xf32> -> vector<8x256xf32>
    %cst_19 = arith.constant 0.000000e+00 : f32
    %68 = vector.broadcast %cst_19 : f32 to vector<8x256xf32>
    %69 = arith.maximumf %67, %68 : vector<8x256xf32>
    %c1 = arith.constant 1 : index
    %c0_20 = arith.constant 0 : index
    %c0_21 = arith.constant 0 : index
    %70 = vector.load %arg4[%c1, %c0_20, %c0_21] : memref<4x8x73xf32, #tpu.memory_space<vmem>>, vector<1x8x73xf32>
    %71 = vector.shape_cast %70 : vector<1x8x73xf32> to vector<8x73xf32>
    %c17_i32_22 = arith.constant 17 : i32
    %72 = tpu.dynamic_rotate %69 by %c17_i32_22 dim 1 : vector<8x256xf32>, i32 -> vector<8x256xf32>
    %73 = vector.broadcast %1 : vector<1x256xf32> to vector<8x256xf32>
    %74 = arith.mulf %72, %73 : vector<8x256xf32>
    %c16_i32_23 = arith.constant 16 : i32
    %75 = tpu.dynamic_rotate %69 by %c16_i32_23 dim 1 : vector<8x256xf32>, i32 -> vector<8x256xf32>
    %76 = vector.broadcast %2 : vector<1x256xf32> to vector<8x256xf32>
    %77 = arith.mulf %75, %76 : vector<8x256xf32>
    %c15_i32_24 = arith.constant 15 : i32
    %78 = tpu.dynamic_rotate %69 by %c15_i32_24 dim 1 : vector<8x256xf32>, i32 -> vector<8x256xf32>
    %79 = vector.broadcast %3 : vector<1x256xf32> to vector<8x256xf32>
    %80 = arith.mulf %78, %79 : vector<8x256xf32>
    %c1_i32_25 = arith.constant 1 : i32
    %81 = tpu.dynamic_rotate %69 by %c1_i32_25 dim 1 : vector<8x256xf32>, i32 -> vector<8x256xf32>
    %82 = vector.broadcast %4 : vector<1x256xf32> to vector<8x256xf32>
    %83 = arith.mulf %81, %82 : vector<8x256xf32>
    %c255_i32_26 = arith.constant 255 : i32
    %84 = tpu.dynamic_rotate %69 by %c255_i32_26 dim 1 : vector<8x256xf32>, i32 -> vector<8x256xf32>
    %85 = vector.broadcast %5 : vector<1x256xf32> to vector<8x256xf32>
    %86 = arith.mulf %84, %85 : vector<8x256xf32>
    %c241_i32_27 = arith.constant 241 : i32
    %87 = tpu.dynamic_rotate %69 by %c241_i32_27 dim 1 : vector<8x256xf32>, i32 -> vector<8x256xf32>
    %88 = vector.broadcast %6 : vector<1x256xf32> to vector<8x256xf32>
    %89 = arith.mulf %87, %88 : vector<8x256xf32>
    %c240_i32_28 = arith.constant 240 : i32
    %90 = tpu.dynamic_rotate %69 by %c240_i32_28 dim 1 : vector<8x256xf32>, i32 -> vector<8x256xf32>
    %91 = vector.broadcast %7 : vector<1x256xf32> to vector<8x256xf32>
    %92 = arith.mulf %90, %91 : vector<8x256xf32>
    %c239_i32_29 = arith.constant 239 : i32
    %93 = tpu.dynamic_rotate %69 by %c239_i32_29 dim 1 : vector<8x256xf32>, i32 -> vector<8x256xf32>
    %94 = vector.broadcast %8 : vector<1x256xf32> to vector<8x256xf32>
    %95 = arith.mulf %93, %94 : vector<8x256xf32>
    %96 = tpu.concatenate %74, %77, %80, %83, %69, %86, %89, %92, %95, %9 in 0 : vector<8x256xf32>, vector<8x256xf32>, vector<8x256xf32>, vector<8x256xf32>, vector<8x256xf32>, vector<8x256xf32>, vector<8x256xf32>, vector<8x256xf32>, vector<8x256xf32>, vector<1x256xf32> -> vector<73x256xf32>
    %cst_30 = arith.constant dense<0.000000e+00> : vector<8x256xf32>
    %97 = tpu.matmul %71, %96, %cst_30 {dimension_numbers = #tpu.dot_dimension_numbers<[1], [0], [0], [1], [0, 0, 1, 1], [], []>} : vector<8x73xf32>, vector<73x256xf32>, vector<8x256xf32> -> vector<8x256xf32>
    %98 = arith.addf %97, %39 : vector<8x256xf32>
    %c2 = arith.constant 2 : index
    %c0_31 = arith.constant 0 : index
    %c0_32 = arith.constant 0 : index
    %99 = vector.load %arg4[%c2, %c0_31, %c0_32] : memref<4x8x73xf32, #tpu.memory_space<vmem>>, vector<1x8x73xf32>
    %100 = vector.shape_cast %99 : vector<1x8x73xf32> to vector<8x73xf32>
    %c17_i32_33 = arith.constant 17 : i32
    %101 = tpu.dynamic_rotate %98 by %c17_i32_33 dim 1 : vector<8x256xf32>, i32 -> vector<8x256xf32>
    %102 = vector.broadcast %1 : vector<1x256xf32> to vector<8x256xf32>
    %103 = arith.mulf %101, %102 : vector<8x256xf32>
    %c16_i32_34 = arith.constant 16 : i32
    %104 = tpu.dynamic_rotate %98 by %c16_i32_34 dim 1 : vector<8x256xf32>, i32 -> vector<8x256xf32>
    %105 = vector.broadcast %2 : vector<1x256xf32> to vector<8x256xf32>
    %106 = arith.mulf %104, %105 : vector<8x256xf32>
    %c15_i32_35 = arith.constant 15 : i32
    %107 = tpu.dynamic_rotate %98 by %c15_i32_35 dim 1 : vector<8x256xf32>, i32 -> vector<8x256xf32>
    %108 = vector.broadcast %3 : vector<1x256xf32> to vector<8x256xf32>
    %109 = arith.mulf %107, %108 : vector<8x256xf32>
    %c1_i32_36 = arith.constant 1 : i32
    %110 = tpu.dynamic_rotate %98 by %c1_i32_36 dim 1 : vector<8x256xf32>, i32 -> vector<8x256xf32>
    %111 = vector.broadcast %4 : vector<1x256xf32> to vector<8x256xf32>
    %112 = arith.mulf %110, %111 : vector<8x256xf32>
    %c255_i32_37 = arith.constant 255 : i32
    %113 = tpu.dynamic_rotate %98 by %c255_i32_37 dim 1 : vector<8x256xf32>, i32 -> vector<8x256xf32>
    %114 = vector.broadcast %5 : vector<1x256xf32> to vector<8x256xf32>
    %115 = arith.mulf %113, %114 : vector<8x256xf32>
    %c241_i32_38 = arith.constant 241 : i32
    %116 = tpu.dynamic_rotate %98 by %c241_i32_38 dim 1 : vector<8x256xf32>, i32 -> vector<8x256xf32>
    %117 = vector.broadcast %6 : vector<1x256xf32> to vector<8x256xf32>
    %118 = arith.mulf %116, %117 : vector<8x256xf32>
    %c240_i32_39 = arith.constant 240 : i32
    %119 = tpu.dynamic_rotate %98 by %c240_i32_39 dim 1 : vector<8x256xf32>, i32 -> vector<8x256xf32>
    %120 = vector.broadcast %7 : vector<1x256xf32> to vector<8x256xf32>
    %121 = arith.mulf %119, %120 : vector<8x256xf32>
    %c239_i32_40 = arith.constant 239 : i32
    %122 = tpu.dynamic_rotate %98 by %c239_i32_40 dim 1 : vector<8x256xf32>, i32 -> vector<8x256xf32>
    %123 = vector.broadcast %8 : vector<1x256xf32> to vector<8x256xf32>
    %124 = arith.mulf %122, %123 : vector<8x256xf32>
    %125 = tpu.concatenate %103, %106, %109, %112, %98, %115, %118, %121, %124, %9 in 0 : vector<8x256xf32>, vector<8x256xf32>, vector<8x256xf32>, vector<8x256xf32>, vector<8x256xf32>, vector<8x256xf32>, vector<8x256xf32>, vector<8x256xf32>, vector<8x256xf32>, vector<1x256xf32> -> vector<73x256xf32>
    %cst_41 = arith.constant dense<0.000000e+00> : vector<8x256xf32>
    %126 = tpu.matmul %100, %125, %cst_41 {dimension_numbers = #tpu.dot_dimension_numbers<[1], [0], [0], [1], [0, 0, 1, 1], [], []>} : vector<8x73xf32>, vector<73x256xf32>, vector<8x256xf32> -> vector<8x256xf32>
    %cst_42 = arith.constant 0.000000e+00 : f32
    %127 = vector.broadcast %cst_42 : f32 to vector<8x256xf32>
    %128 = arith.maximumf %126, %127 : vector<8x256xf32>
    %c3 = arith.constant 3 : index
    %c0_43 = arith.constant 0 : index
    %c0_44 = arith.constant 0 : index
    %129 = vector.load %arg4[%c3, %c0_43, %c0_44] : memref<4x8x73xf32, #tpu.memory_space<vmem>>, vector<1x8x73xf32>
    %130 = vector.shape_cast %129 : vector<1x8x73xf32> to vector<8x73xf32>
    %c17_i32_45 = arith.constant 17 : i32
    %131 = tpu.dynamic_rotate %128 by %c17_i32_45 dim 1 : vector<8x256xf32>, i32 -> vector<8x256xf32>
    %132 = vector.broadcast %1 : vector<1x256xf32> to vector<8x256xf32>
    %133 = arith.mulf %131, %132 : vector<8x256xf32>
    %c16_i32_46 = arith.constant 16 : i32
    %134 = tpu.dynamic_rotate %128 by %c16_i32_46 dim 1 : vector<8x256xf32>, i32 -> vector<8x256xf32>
    %135 = vector.broadcast %2 : vector<1x256xf32> to vector<8x256xf32>
    %136 = arith.mulf %134, %135 : vector<8x256xf32>
    %c15_i32_47 = arith.constant 15 : i32
    %137 = tpu.dynamic_rotate %128 by %c15_i32_47 dim 1 : vector<8x256xf32>, i32 -> vector<8x256xf32>
    %138 = vector.broadcast %3 : vector<1x256xf32> to vector<8x256xf32>
    %139 = arith.mulf %137, %138 : vector<8x256xf32>
    %c1_i32_48 = arith.constant 1 : i32
    %140 = tpu.dynamic_rotate %128 by %c1_i32_48 dim 1 : vector<8x256xf32>, i32 -> vector<8x256xf32>
    %141 = vector.broadcast %4 : vector<1x256xf32> to vector<8x256xf32>
    %142 = arith.mulf %140, %141 : vector<8x256xf32>
    %c255_i32_49 = arith.constant 255 : i32
    %143 = tpu.dynamic_rotate %128 by %c255_i32_49 dim 1 : vector<8x256xf32>, i32 -> vector<8x256xf32>
    %144 = vector.broadcast %5 : vector<1x256xf32> to vector<8x256xf32>
    %145 = arith.mulf %143, %144 : vector<8x256xf32>
    %c241_i32_50 = arith.constant 241 : i32
    %146 = tpu.dynamic_rotate %128 by %c241_i32_50 dim 1 : vector<8x256xf32>, i32 -> vector<8x256xf32>
    %147 = vector.broadcast %6 : vector<1x256xf32> to vector<8x256xf32>
    %148 = arith.mulf %146, %147 : vector<8x256xf32>
    %c240_i32_51 = arith.constant 240 : i32
    %149 = tpu.dynamic_rotate %128 by %c240_i32_51 dim 1 : vector<8x256xf32>, i32 -> vector<8x256xf32>
    %150 = vector.broadcast %7 : vector<1x256xf32> to vector<8x256xf32>
    %151 = arith.mulf %149, %150 : vector<8x256xf32>
    %c239_i32_52 = arith.constant 239 : i32
    %152 = tpu.dynamic_rotate %128 by %c239_i32_52 dim 1 : vector<8x256xf32>, i32 -> vector<8x256xf32>
    %153 = vector.broadcast %8 : vector<1x256xf32> to vector<8x256xf32>
    %154 = arith.mulf %152, %153 : vector<8x256xf32>
    %155 = tpu.concatenate %133, %136, %139, %142, %128, %145, %148, %151, %154, %9 in 0 : vector<8x256xf32>, vector<8x256xf32>, vector<8x256xf32>, vector<8x256xf32>, vector<8x256xf32>, vector<8x256xf32>, vector<8x256xf32>, vector<8x256xf32>, vector<8x256xf32>, vector<1x256xf32> -> vector<73x256xf32>
    %cst_53 = arith.constant dense<0.000000e+00> : vector<8x256xf32>
    %156 = tpu.matmul %130, %155, %cst_53 {dimension_numbers = #tpu.dot_dimension_numbers<[1], [0], [0], [1], [0, 0, 1, 1], [], []>} : vector<8x73xf32>, vector<73x256xf32>, vector<8x256xf32> -> vector<8x256xf32>
    %157 = arith.addf %156, %98 : vector<8x256xf32>
    %c0_54 = arith.constant 0 : index
    %c0_55 = arith.constant 0 : index
    %158 = vector.load %arg5[%c0_54, %c0_55] : memref<16x73xf32, #tpu.memory_space<vmem>>, vector<16x73xf32>
    %c17_i32_56 = arith.constant 17 : i32
    %159 = tpu.dynamic_rotate %157 by %c17_i32_56 dim 1 : vector<8x256xf32>, i32 -> vector<8x256xf32>
    %160 = vector.broadcast %1 : vector<1x256xf32> to vector<8x256xf32>
    %161 = arith.mulf %159, %160 : vector<8x256xf32>
    %c16_i32_57 = arith.constant 16 : i32
    %162 = tpu.dynamic_rotate %157 by %c16_i32_57 dim 1 : vector<8x256xf32>, i32 -> vector<8x256xf32>
    %163 = vector.broadcast %2 : vector<1x256xf32> to vector<8x256xf32>
    %164 = arith.mulf %162, %163 : vector<8x256xf32>
    %c15_i32_58 = arith.constant 15 : i32
    %165 = tpu.dynamic_rotate %157 by %c15_i32_58 dim 1 : vector<8x256xf32>, i32 -> vector<8x256xf32>
    %166 = vector.broadcast %3 : vector<1x256xf32> to vector<8x256xf32>
    %167 = arith.mulf %165, %166 : vector<8x256xf32>
    %c1_i32_59 = arith.constant 1 : i32
    %168 = tpu.dynamic_rotate %157 by %c1_i32_59 dim 1 : vector<8x256xf32>, i32 -> vector<8x256xf32>
    %169 = vector.broadcast %4 : vector<1x256xf32> to vector<8x256xf32>
    %170 = arith.mulf %168, %169 : vector<8x256xf32>
    %c255_i32_60 = arith.constant 255 : i32
    %171 = tpu.dynamic_rotate %157 by %c255_i32_60 dim 1 : vector<8x256xf32>, i32 -> vector<8x256xf32>
    %172 = vector.broadcast %5 : vector<1x256xf32> to vector<8x256xf32>
    %173 = arith.mulf %171, %172 : vector<8x256xf32>
    %c241_i32_61 = arith.constant 241 : i32
    %174 = tpu.dynamic_rotate %157 by %c241_i32_61 dim 1 : vector<8x256xf32>, i32 -> vector<8x256xf32>
    %175 = vector.broadcast %6 : vector<1x256xf32> to vector<8x256xf32>
    %176 = arith.mulf %174, %175 : vector<8x256xf32>
    %c240_i32_62 = arith.constant 240 : i32
    %177 = tpu.dynamic_rotate %157 by %c240_i32_62 dim 1 : vector<8x256xf32>, i32 -> vector<8x256xf32>
    %178 = vector.broadcast %7 : vector<1x256xf32> to vector<8x256xf32>
    %179 = arith.mulf %177, %178 : vector<8x256xf32>
    %c239_i32_63 = arith.constant 239 : i32
    %180 = tpu.dynamic_rotate %157 by %c239_i32_63 dim 1 : vector<8x256xf32>, i32 -> vector<8x256xf32>
    %181 = vector.broadcast %8 : vector<1x256xf32> to vector<8x256xf32>
    %182 = arith.mulf %180, %181 : vector<8x256xf32>
    %183 = tpu.concatenate %161, %164, %167, %170, %157, %173, %176, %179, %182, %9 in 0 : vector<8x256xf32>, vector<8x256xf32>, vector<8x256xf32>, vector<8x256xf32>, vector<8x256xf32>, vector<8x256xf32>, vector<8x256xf32>, vector<8x256xf32>, vector<8x256xf32>, vector<1x256xf32> -> vector<73x256xf32>
    %cst_64 = arith.constant dense<0.000000e+00> : vector<16x256xf32>
    %184 = tpu.matmul %158, %183, %cst_64 {dimension_numbers = #tpu.dot_dimension_numbers<[1], [0], [0], [1], [0, 0, 1, 1], [], []>} : vector<16x73xf32>, vector<73x256xf32>, vector<16x256xf32> -> vector<16x256xf32>
    %cst_65 = arith.constant 0.000000e+00 : f32
    %185 = vector.broadcast %cst_65 : f32 to vector<16x256xf32>
    %186 = arith.maximumf %184, %185 : vector<16x256xf32>
    %c0_66 = arith.constant 0 : index
    %c0_67 = arith.constant 0 : index
    %c0_68 = arith.constant 0 : index
    %187 = vector.load %arg6[%c0_66, %c0_67, %c0_68] : memref<4x16x145xf32, #tpu.memory_space<vmem>>, vector<1x16x145xf32>
    %188 = vector.shape_cast %187 : vector<1x16x145xf32> to vector<16x145xf32>
    %c17_i32_69 = arith.constant 17 : i32
    %189 = tpu.dynamic_rotate %186 by %c17_i32_69 dim 1 : vector<16x256xf32>, i32 -> vector<16x256xf32>
    %190 = vector.broadcast %1 : vector<1x256xf32> to vector<16x256xf32>
    %191 = arith.mulf %189, %190 : vector<16x256xf32>
    %c16_i32_70 = arith.constant 16 : i32
    %192 = tpu.dynamic_rotate %186 by %c16_i32_70 dim 1 : vector<16x256xf32>, i32 -> vector<16x256xf32>
    %193 = vector.broadcast %2 : vector<1x256xf32> to vector<16x256xf32>
    %194 = arith.mulf %192, %193 : vector<16x256xf32>
    %c15_i32_71 = arith.constant 15 : i32
    %195 = tpu.dynamic_rotate %186 by %c15_i32_71 dim 1 : vector<16x256xf32>, i32 -> vector<16x256xf32>
    %196 = vector.broadcast %3 : vector<1x256xf32> to vector<16x256xf32>
    %197 = arith.mulf %195, %196 : vector<16x256xf32>
    %c1_i32_72 = arith.constant 1 : i32
    %198 = tpu.dynamic_rotate %186 by %c1_i32_72 dim 1 : vector<16x256xf32>, i32 -> vector<16x256xf32>
    %199 = vector.broadcast %4 : vector<1x256xf32> to vector<16x256xf32>
    %200 = arith.mulf %198, %199 : vector<16x256xf32>
    %c255_i32_73 = arith.constant 255 : i32
    %201 = tpu.dynamic_rotate %186 by %c255_i32_73 dim 1 : vector<16x256xf32>, i32 -> vector<16x256xf32>
    %202 = vector.broadcast %5 : vector<1x256xf32> to vector<16x256xf32>
    %203 = arith.mulf %201, %202 : vector<16x256xf32>
    %c241_i32_74 = arith.constant 241 : i32
    %204 = tpu.dynamic_rotate %186 by %c241_i32_74 dim 1 : vector<16x256xf32>, i32 -> vector<16x256xf32>
    %205 = vector.broadcast %6 : vector<1x256xf32> to vector<16x256xf32>
    %206 = arith.mulf %204, %205 : vector<16x256xf32>
    %c240_i32_75 = arith.constant 240 : i32
    %207 = tpu.dynamic_rotate %186 by %c240_i32_75 dim 1 : vector<16x256xf32>, i32 -> vector<16x256xf32>
    %208 = vector.broadcast %7 : vector<1x256xf32> to vector<16x256xf32>
    %209 = arith.mulf %207, %208 : vector<16x256xf32>
    %c239_i32_76 = arith.constant 239 : i32
    %210 = tpu.dynamic_rotate %186 by %c239_i32_76 dim 1 : vector<16x256xf32>, i32 -> vector<16x256xf32>
    %211 = vector.broadcast %8 : vector<1x256xf32> to vector<16x256xf32>
    %212 = arith.mulf %210, %211 : vector<16x256xf32>
    %213 = tpu.concatenate %191, %194, %197, %200, %186, %203, %206, %209, %212, %9 in 0 : vector<16x256xf32>, vector<16x256xf32>, vector<16x256xf32>, vector<16x256xf32>, vector<16x256xf32>, vector<16x256xf32>, vector<16x256xf32>, vector<16x256xf32>, vector<16x256xf32>, vector<1x256xf32> -> vector<145x256xf32>
    %cst_77 = arith.constant dense<0.000000e+00> : vector<16x256xf32>
    %214 = tpu.matmul %188, %213, %cst_77 {dimension_numbers = #tpu.dot_dimension_numbers<[1], [0], [0], [1], [0, 0, 1, 1], [], []>} : vector<16x145xf32>, vector<145x256xf32>, vector<16x256xf32> -> vector<16x256xf32>
    %cst_78 = arith.constant 0.000000e+00 : f32
    %215 = vector.broadcast %cst_78 : f32 to vector<16x256xf32>
    %216 = arith.maximumf %214, %215 : vector<16x256xf32>
    %c1_79 = arith.constant 1 : index
    %c0_80 = arith.constant 0 : index
    %c0_81 = arith.constant 0 : index
    %217 = vector.load %arg6[%c1_79, %c0_80, %c0_81] : memref<4x16x145xf32, #tpu.memory_space<vmem>>, vector<1x16x145xf32>
    %218 = vector.shape_cast %217 : vector<1x16x145xf32> to vector<16x145xf32>
    %c17_i32_82 = arith.constant 17 : i32
    %219 = tpu.dynamic_rotate %216 by %c17_i32_82 dim 1 : vector<16x256xf32>, i32 -> vector<16x256xf32>
    %220 = vector.broadcast %1 : vector<1x256xf32> to vector<16x256xf32>
    %221 = arith.mulf %219, %220 : vector<16x256xf32>
    %c16_i32_83 = arith.constant 16 : i32
    %222 = tpu.dynamic_rotate %216 by %c16_i32_83 dim 1 : vector<16x256xf32>, i32 -> vector<16x256xf32>
    %223 = vector.broadcast %2 : vector<1x256xf32> to vector<16x256xf32>
    %224 = arith.mulf %222, %223 : vector<16x256xf32>
    %c15_i32_84 = arith.constant 15 : i32
    %225 = tpu.dynamic_rotate %216 by %c15_i32_84 dim 1 : vector<16x256xf32>, i32 -> vector<16x256xf32>
    %226 = vector.broadcast %3 : vector<1x256xf32> to vector<16x256xf32>
    %227 = arith.mulf %225, %226 : vector<16x256xf32>
    %c1_i32_85 = arith.constant 1 : i32
    %228 = tpu.dynamic_rotate %216 by %c1_i32_85 dim 1 : vector<16x256xf32>, i32 -> vector<16x256xf32>
    %229 = vector.broadcast %4 : vector<1x256xf32> to vector<16x256xf32>
    %230 = arith.mulf %228, %229 : vector<16x256xf32>
    %c255_i32_86 = arith.constant 255 : i32
    %231 = tpu.dynamic_rotate %216 by %c255_i32_86 dim 1 : vector<16x256xf32>, i32 -> vector<16x256xf32>
    %232 = vector.broadcast %5 : vector<1x256xf32> to vector<16x256xf32>
    %233 = arith.mulf %231, %232 : vector<16x256xf32>
    %c241_i32_87 = arith.constant 241 : i32
    %234 = tpu.dynamic_rotate %216 by %c241_i32_87 dim 1 : vector<16x256xf32>, i32 -> vector<16x256xf32>
    %235 = vector.broadcast %6 : vector<1x256xf32> to vector<16x256xf32>
    %236 = arith.mulf %234, %235 : vector<16x256xf32>
    %c240_i32_88 = arith.constant 240 : i32
    %237 = tpu.dynamic_rotate %216 by %c240_i32_88 dim 1 : vector<16x256xf32>, i32 -> vector<16x256xf32>
    %238 = vector.broadcast %7 : vector<1x256xf32> to vector<16x256xf32>
    %239 = arith.mulf %237, %238 : vector<16x256xf32>
    %c239_i32_89 = arith.constant 239 : i32
    %240 = tpu.dynamic_rotate %216 by %c239_i32_89 dim 1 : vector<16x256xf32>, i32 -> vector<16x256xf32>
    %241 = vector.broadcast %8 : vector<1x256xf32> to vector<16x256xf32>
    %242 = arith.mulf %240, %241 : vector<16x256xf32>
    %243 = tpu.concatenate %221, %224, %227, %230, %216, %233, %236, %239, %242, %9 in 0 : vector<16x256xf32>, vector<16x256xf32>, vector<16x256xf32>, vector<16x256xf32>, vector<16x256xf32>, vector<16x256xf32>, vector<16x256xf32>, vector<16x256xf32>, vector<16x256xf32>, vector<1x256xf32> -> vector<145x256xf32>
    %cst_90 = arith.constant dense<0.000000e+00> : vector<16x256xf32>
    %244 = tpu.matmul %218, %243, %cst_90 {dimension_numbers = #tpu.dot_dimension_numbers<[1], [0], [0], [1], [0, 0, 1, 1], [], []>} : vector<16x145xf32>, vector<145x256xf32>, vector<16x256xf32> -> vector<16x256xf32>
    %245 = arith.addf %244, %186 : vector<16x256xf32>
    %c2_91 = arith.constant 2 : index
    %c0_92 = arith.constant 0 : index
    %c0_93 = arith.constant 0 : index
    %246 = vector.load %arg6[%c2_91, %c0_92, %c0_93] : memref<4x16x145xf32, #tpu.memory_space<vmem>>, vector<1x16x145xf32>
    %247 = vector.shape_cast %246 : vector<1x16x145xf32> to vector<16x145xf32>
    %c17_i32_94 = arith.constant 17 : i32
    %248 = tpu.dynamic_rotate %245 by %c17_i32_94 dim 1 : vector<16x256xf32>, i32 -> vector<16x256xf32>
    %249 = vector.broadcast %1 : vector<1x256xf32> to vector<16x256xf32>
    %250 = arith.mulf %248, %249 : vector<16x256xf32>
    %c16_i32_95 = arith.constant 16 : i32
    %251 = tpu.dynamic_rotate %245 by %c16_i32_95 dim 1 : vector<16x256xf32>, i32 -> vector<16x256xf32>
    %252 = vector.broadcast %2 : vector<1x256xf32> to vector<16x256xf32>
    %253 = arith.mulf %251, %252 : vector<16x256xf32>
    %c15_i32_96 = arith.constant 15 : i32
    %254 = tpu.dynamic_rotate %245 by %c15_i32_96 dim 1 : vector<16x256xf32>, i32 -> vector<16x256xf32>
    %255 = vector.broadcast %3 : vector<1x256xf32> to vector<16x256xf32>
    %256 = arith.mulf %254, %255 : vector<16x256xf32>
    %c1_i32_97 = arith.constant 1 : i32
    %257 = tpu.dynamic_rotate %245 by %c1_i32_97 dim 1 : vector<16x256xf32>, i32 -> vector<16x256xf32>
    %258 = vector.broadcast %4 : vector<1x256xf32> to vector<16x256xf32>
    %259 = arith.mulf %257, %258 : vector<16x256xf32>
    %c255_i32_98 = arith.constant 255 : i32
    %260 = tpu.dynamic_rotate %245 by %c255_i32_98 dim 1 : vector<16x256xf32>, i32 -> vector<16x256xf32>
    %261 = vector.broadcast %5 : vector<1x256xf32> to vector<16x256xf32>
    %262 = arith.mulf %260, %261 : vector<16x256xf32>
    %c241_i32_99 = arith.constant 241 : i32
    %263 = tpu.dynamic_rotate %245 by %c241_i32_99 dim 1 : vector<16x256xf32>, i32 -> vector<16x256xf32>
    %264 = vector.broadcast %6 : vector<1x256xf32> to vector<16x256xf32>
    %265 = arith.mulf %263, %264 : vector<16x256xf32>
    %c240_i32_100 = arith.constant 240 : i32
    %266 = tpu.dynamic_rotate %245 by %c240_i32_100 dim 1 : vector<16x256xf32>, i32 -> vector<16x256xf32>
    %267 = vector.broadcast %7 : vector<1x256xf32> to vector<16x256xf32>
    %268 = arith.mulf %266, %267 : vector<16x256xf32>
    %c239_i32_101 = arith.constant 239 : i32
    %269 = tpu.dynamic_rotate %245 by %c239_i32_101 dim 1 : vector<16x256xf32>, i32 -> vector<16x256xf32>
    %270 = vector.broadcast %8 : vector<1x256xf32> to vector<16x256xf32>
    %271 = arith.mulf %269, %270 : vector<16x256xf32>
    %272 = tpu.concatenate %250, %253, %256, %259, %245, %262, %265, %268, %271, %9 in 0 : vector<16x256xf32>, vector<16x256xf32>, vector<16x256xf32>, vector<16x256xf32>, vector<16x256xf32>, vector<16x256xf32>, vector<16x256xf32>, vector<16x256xf32>, vector<16x256xf32>, vector<1x256xf32> -> vector<145x256xf32>
    %cst_102 = arith.constant dense<0.000000e+00> : vector<16x256xf32>
    %273 = tpu.matmul %247, %272, %cst_102 {dimension_numbers = #tpu.dot_dimension_numbers<[1], [0], [0], [1], [0, 0, 1, 1], [], []>} : vector<16x145xf32>, vector<145x256xf32>, vector<16x256xf32> -> vector<16x256xf32>
    %cst_103 = arith.constant 0.000000e+00 : f32
    %274 = vector.broadcast %cst_103 : f32 to vector<16x256xf32>
    %275 = arith.maximumf %273, %274 : vector<16x256xf32>
    %c3_104 = arith.constant 3 : index
    %c0_105 = arith.constant 0 : index
    %c0_106 = arith.constant 0 : index
    %276 = vector.load %arg6[%c3_104, %c0_105, %c0_106] : memref<4x16x145xf32, #tpu.memory_space<vmem>>, vector<1x16x145xf32>
    %277 = vector.shape_cast %276 : vector<1x16x145xf32> to vector<16x145xf32>
    %c17_i32_107 = arith.constant 17 : i32
    %278 = tpu.dynamic_rotate %275 by %c17_i32_107 dim 1 : vector<16x256xf32>, i32 -> vector<16x256xf32>
    %279 = vector.broadcast %1 : vector<1x256xf32> to vector<16x256xf32>
    %280 = arith.mulf %278, %279 : vector<16x256xf32>
    %c16_i32_108 = arith.constant 16 : i32
    %281 = tpu.dynamic_rotate %275 by %c16_i32_108 dim 1 : vector<16x256xf32>, i32 -> vector<16x256xf32>
    %282 = vector.broadcast %2 : vector<1x256xf32> to vector<16x256xf32>
    %283 = arith.mulf %281, %282 : vector<16x256xf32>
    %c15_i32_109 = arith.constant 15 : i32
    %284 = tpu.dynamic_rotate %275 by %c15_i32_109 dim 1 : vector<16x256xf32>, i32 -> vector<16x256xf32>
    %285 = vector.broadcast %3 : vector<1x256xf32> to vector<16x256xf32>
    %286 = arith.mulf %284, %285 : vector<16x256xf32>
    %c1_i32_110 = arith.constant 1 : i32
    %287 = tpu.dynamic_rotate %275 by %c1_i32_110 dim 1 : vector<16x256xf32>, i32 -> vector<16x256xf32>
    %288 = vector.broadcast %4 : vector<1x256xf32> to vector<16x256xf32>
    %289 = arith.mulf %287, %288 : vector<16x256xf32>
    %c255_i32_111 = arith.constant 255 : i32
    %290 = tpu.dynamic_rotate %275 by %c255_i32_111 dim 1 : vector<16x256xf32>, i32 -> vector<16x256xf32>
    %291 = vector.broadcast %5 : vector<1x256xf32> to vector<16x256xf32>
    %292 = arith.mulf %290, %291 : vector<16x256xf32>
    %c241_i32_112 = arith.constant 241 : i32
    %293 = tpu.dynamic_rotate %275 by %c241_i32_112 dim 1 : vector<16x256xf32>, i32 -> vector<16x256xf32>
    %294 = vector.broadcast %6 : vector<1x256xf32> to vector<16x256xf32>
    %295 = arith.mulf %293, %294 : vector<16x256xf32>
    %c240_i32_113 = arith.constant 240 : i32
    %296 = tpu.dynamic_rotate %275 by %c240_i32_113 dim 1 : vector<16x256xf32>, i32 -> vector<16x256xf32>
    %297 = vector.broadcast %7 : vector<1x256xf32> to vector<16x256xf32>
    %298 = arith.mulf %296, %297 : vector<16x256xf32>
    %c239_i32_114 = arith.constant 239 : i32
    %299 = tpu.dynamic_rotate %275 by %c239_i32_114 dim 1 : vector<16x256xf32>, i32 -> vector<16x256xf32>
    %300 = vector.broadcast %8 : vector<1x256xf32> to vector<16x256xf32>
    %301 = arith.mulf %299, %300 : vector<16x256xf32>
    %302 = tpu.concatenate %280, %283, %286, %289, %275, %292, %295, %298, %301, %9 in 0 : vector<16x256xf32>, vector<16x256xf32>, vector<16x256xf32>, vector<16x256xf32>, vector<16x256xf32>, vector<16x256xf32>, vector<16x256xf32>, vector<16x256xf32>, vector<16x256xf32>, vector<1x256xf32> -> vector<145x256xf32>
    %cst_115 = arith.constant dense<0.000000e+00> : vector<16x256xf32>
    %303 = tpu.matmul %277, %302, %cst_115 {dimension_numbers = #tpu.dot_dimension_numbers<[1], [0], [0], [1], [0, 0, 1, 1], [], []>} : vector<16x145xf32>, vector<145x256xf32>, vector<16x256xf32> -> vector<16x256xf32>
    %304 = arith.addf %303, %245 : vector<16x256xf32>
    %c0_116 = arith.constant 0 : index
    %c0_117 = arith.constant 0 : index
    %305 = vector.load %arg7[%c0_116, %c0_117] : memref<4x145xf32, #tpu.memory_space<vmem>>, vector<4x145xf32>
    %c17_i32_118 = arith.constant 17 : i32
    %306 = tpu.dynamic_rotate %304 by %c17_i32_118 dim 1 : vector<16x256xf32>, i32 -> vector<16x256xf32>
    %307 = vector.broadcast %1 : vector<1x256xf32> to vector<16x256xf32>
    %308 = arith.mulf %306, %307 : vector<16x256xf32>
    %c16_i32_119 = arith.constant 16 : i32
    %309 = tpu.dynamic_rotate %304 by %c16_i32_119 dim 1 : vector<16x256xf32>, i32 -> vector<16x256xf32>
    %310 = vector.broadcast %2 : vector<1x256xf32> to vector<16x256xf32>
    %311 = arith.mulf %309, %310 : vector<16x256xf32>
    %c15_i32_120 = arith.constant 15 : i32
    %312 = tpu.dynamic_rotate %304 by %c15_i32_120 dim 1 : vector<16x256xf32>, i32 -> vector<16x256xf32>
    %313 = vector.broadcast %3 : vector<1x256xf32> to vector<16x256xf32>
    %314 = arith.mulf %312, %313 : vector<16x256xf32>
    %c1_i32_121 = arith.constant 1 : i32
    %315 = tpu.dynamic_rotate %304 by %c1_i32_121 dim 1 : vector<16x256xf32>, i32 -> vector<16x256xf32>
    %316 = vector.broadcast %4 : vector<1x256xf32> to vector<16x256xf32>
    %317 = arith.mulf %315, %316 : vector<16x256xf32>
    %c255_i32_122 = arith.constant 255 : i32
    %318 = tpu.dynamic_rotate %304 by %c255_i32_122 dim 1 : vector<16x256xf32>, i32 -> vector<16x256xf32>
    %319 = vector.broadcast %5 : vector<1x256xf32> to vector<16x256xf32>
    %320 = arith.mulf %318, %319 : vector<16x256xf32>
    %c241_i32_123 = arith.constant 241 : i32
    %321 = tpu.dynamic_rotate %304 by %c241_i32_123 dim 1 : vector<16x256xf32>, i32 -> vector<16x256xf32>
    %322 = vector.broadcast %6 : vector<1x256xf32> to vector<16x256xf32>
    %323 = arith.mulf %321, %322 : vector<16x256xf32>
    %c240_i32_124 = arith.constant 240 : i32
    %324 = tpu.dynamic_rotate %304 by %c240_i32_124 dim 1 : vector<16x256xf32>, i32 -> vector<16x256xf32>
    %325 = vector.broadcast %7 : vector<1x256xf32> to vector<16x256xf32>
    %326 = arith.mulf %324, %325 : vector<16x256xf32>
    %c239_i32_125 = arith.constant 239 : i32
    %327 = tpu.dynamic_rotate %304 by %c239_i32_125 dim 1 : vector<16x256xf32>, i32 -> vector<16x256xf32>
    %328 = vector.broadcast %8 : vector<1x256xf32> to vector<16x256xf32>
    %329 = arith.mulf %327, %328 : vector<16x256xf32>
    %330 = tpu.concatenate %308, %311, %314, %317, %304, %320, %323, %326, %329, %9 in 0 : vector<16x256xf32>, vector<16x256xf32>, vector<16x256xf32>, vector<16x256xf32>, vector<16x256xf32>, vector<16x256xf32>, vector<16x256xf32>, vector<16x256xf32>, vector<16x256xf32>, vector<1x256xf32> -> vector<145x256xf32>
    %cst_126 = arith.constant dense<0.000000e+00> : vector<4x256xf32>
    %331 = tpu.matmul %305, %330, %cst_126 {dimension_numbers = #tpu.dot_dimension_numbers<[1], [0], [0], [1], [0, 0, 1, 1], [], []>} : vector<4x145xf32>, vector<145x256xf32>, vector<4x256xf32> -> vector<4x256xf32>
    %c0_127 = arith.constant 0 : index
    %c0_128 = arith.constant 0 : index
    %332 = vector.load %arg8[%c0_127, %c0_128] : memref<4x256xf32, #tpu.memory_space<vmem>>, vector<4x256xf32>
    tpu.vector_store %arg8[%c0_127, %c0_128], %331 {strides = array<i32>} : memref<4x256xf32, #tpu.memory_space<vmem>>, vector<4x256xf32>,
    return
  }
  func.func @transform_0(%arg0: i32) -> (i32, i32) {
    %c0_i32 = arith.constant 0 : i32
    %c0_i32_0 = arith.constant 0 : i32
    return %c0_i32, %arg0 : i32, i32
  }
  func.func @transform_1(%arg0: i32) -> (i32, i32) {
    %c0_i32 = arith.constant 0 : i32
    %c0_i32_0 = arith.constant 0 : i32
    %c0_i32_1 = arith.constant 0 : i32
    return %c0_i32, %c0_i32_0 : i32, i32
  }
  func.func @transform_2(%arg0: i32) -> (i32, i32) {
    %c0_i32 = arith.constant 0 : i32
    %c0_i32_0 = arith.constant 0 : i32
    %c0_i32_1 = arith.constant 0 : i32
    return %c0_i32, %c0_i32_0 : i32, i32
  }
  func.func @transform_3(%arg0: i32) -> (i32, i32, i32) {
    %c0_i32 = arith.constant 0 : i32
    %c0_i32_0 = arith.constant 0 : i32
    %c0_i32_1 = arith.constant 0 : i32
    %c0_i32_2 = arith.constant 0 : i32
    return %c0_i32, %c0_i32_0, %c0_i32_1 : i32, i32, i32
  }
  func.func @transform_4(%arg0: i32) -> (i32, i32) {
    %c0_i32 = arith.constant 0 : i32
    %c0_i32_0 = arith.constant 0 : i32
    %c0_i32_1 = arith.constant 0 : i32
    return %c0_i32, %c0_i32_0 : i32, i32
  }
  func.func @transform_5(%arg0: i32) -> (i32, i32, i32) {
    %c0_i32 = arith.constant 0 : i32
    %c0_i32_0 = arith.constant 0 : i32
    %c0_i32_1 = arith.constant 0 : i32
    %c0_i32_2 = arith.constant 0 : i32
    return %c0_i32, %c0_i32_0, %c0_i32_1 : i32, i32, i32
  }
  func.func @transform_6(%arg0: i32) -> (i32, i32) {
    %c0_i32 = arith.constant 0 : i32
    %c0_i32_0 = arith.constant 0 : i32
    %c0_i32_1 = arith.constant 0 : i32
    return %c0_i32, %c0_i32_0 : i32, i32
  }
  func.func @transform_7(%arg0: i32) -> (i32, i32) {
    %c0_i32 = arith.constant 0 : i32
    %c0_i32_0 = arith.constant 0 : i32
    return %c0_i32, %arg0 : i32, i32
  }
}

</mosaic_0001>

<llo_original>
// kernel: _lambda_.1
$region0: #{_lambda_.1}
  #allocation0 [shape = 'u32[]', space=smem, size = 0x4, offset = 0x4, fixed_abs, tag = 'smem constant byte address 0x4 - core index']
  #allocation1 [shape = 'u32[144,128]{1,0:T(1,128)}', space=vmem, size = 0x12000, scoped, tag = 'internal scratch']
  %s0 = inlined_call_operand.vmem [shape: f32[8,512], index: 0, kind: input, shape index: {}]
  %s1 = inlined_call_operand.vmem [shape: f32[9,256], index: 1, kind: input, shape index: {}]
  %s2 = inlined_call_operand.vmem [shape: f32[8,73], index: 2, kind: input, shape index: {}]
  %s3 = inlined_call_operand.vmem [shape: f32[4,8,73], index: 3, kind: input, shape index: {}]
  %s4 = inlined_call_operand.vmem [shape: f32[16,73], index: 4, kind: input, shape index: {}]
  %s5 = inlined_call_operand.vmem [shape: f32[4,16,145], index: 5, kind: input, shape index: {}]
  %s6 = inlined_call_operand.vmem [shape: f32[4,145], index: 6, kind: input, shape index: {}]
  %s7 = inlined_call_operand.vmem [shape: f32[4,512], index: 7, kind: output, shape index: {}]
  %s8 = sld [smem:[#allocation0]]
  $region61: #{_lambda_.1} parent=0
    _
  %s10 = ssub.s32 1, %s8
  %s11 = scalar_select 0, %s10, %s8
  loop: start=0, step=1, limit=4
  $region2: #{_lambda_.1} parent=0 // loop_pre_header
    _
  $region3: #{_lambda_.1} parent=0 // loop_header
    %s13 = sphi 0, %s17
    %p14 = scmp.ge.s32.totalorder %s13, 4
    %s23 = sphi 0, %s25
    %s26 = sphi 0, %s23
    %s27 = sphi 0, %s26
    %s43 = sphi 0, %s27
    %s47 = sphi 0, %s47
    %s49 = sphi 0, %s47
    %s50 = sphi 0, %s49
    %s64 = sphi 0, %s50
    %s68 = sphi 0, %s68
    %s70 = sphi 0, %s68
    %s71 = sphi 0, %s70
    %s85 = sphi 0, %s71
    %s89 = sphi 0, %s89
    %s91 = sphi 0, %s89
    %s92 = sphi 0, %s91
    %s106 = sphi 0, %s92
    %s110 = sphi 0, %s110
    %s112 = sphi 0, %s110
    %s113 = sphi 0, %s112
    %s127 = sphi 0, %s113
    %s131 = sphi 0, %s131
    %s133 = sphi 0, %s131
    %s134 = sphi 0, %s133
    %s148 = sphi 0, %s134
    %s152 = sphi 0, %s152
    %s154 = sphi 0, %s152
    %s155 = sphi 0, %s154
    %s169 = sphi 0, %s155
    %s175 = sphi 0, %s177
    %s178 = sphi 0, %s175
    %s179 = sphi 0, %s178
    %s195 = sphi 0, %s179
  $region4: #{_lambda_.1} parent=0 // loop_header_branch
    %16 = sbr.rel (%p14) target = $region8
  $region5: #{_lambda_.1} parent=0 // loop_body
    %s18 = ssub.s32 %s13, 1
    %s19 = ssub.s32 %s13, 2
    %s20 = sadd.s32 %s13, 1
    %s21 = ssub.s32 %s13, %s20
    %p22 = scmp.eq.s32.totalorder %s21, 0
    %s24 = sadd.s32 %s23, 1
    %s25 = scalar_select %p22, %s23, %s24
    %p28 = pneg %p22
    %p29 = scmp.eq.s32.totalorder %s13, 1
    %p30 = por %p28, %p29
    %p31 = scmp.ne.s32.totalorder %s23, %s26
    %p32 = scmp.eq.s32.totalorder %s13, 0
    %p33 = por %p31, %p32
    %p34 = scmp.ne.s32.totalorder %s23, %s26
    %p35 = scmp.eq.s32.totalorder %s18, 1
    %p36 = por %p34, %p35
    %p37 = scmp.ne.s32.totalorder %s26, %s27
    %p38 = scmp.eq.s32.totalorder %s18, 0
    %p39 = por %p37, %p38
    %p40 = scmp.ne.s32.totalorder %s26, %s27
    %p41 = scmp.eq.s32.totalorder %s19, 1
    %p42 = por %p40, %p41
    %p44 = scmp.ne.s32.totalorder %s27, %s43
    %p45 = scmp.eq.s32.totalorder %s19, 0
    %p46 = por %p44, %p45
    %s48 = sadd.s32 %s47, 1
    %p51 = scmp.eq.s32.totalorder %s13, 1
    %p52 = scmp.ne.s32.totalorder %s47, %s49
    %p53 = scmp.eq.s32.totalorder %s13, 0
    %p54 = por %p52, %p53
    %p55 = scmp.ne.s32.totalorder %s47, %s49
    %p56 = scmp.eq.s32.totalorder %s18, 1
    %p57 = por %p55, %p56
    %p58 = scmp.ne.s32.totalorder %s49, %s50
    %p59 = scmp.eq.s32.totalorder %s18, 0
    %p60 = por %p58, %p59
    %p61 = scmp.ne.s32.totalorder %s49, %s50
    %p62 = scmp.eq.s32.totalorder %s19, 1
    %p63 = por %p61, %p62
    %p65 = scmp.ne.s32.totalorder %s50, %s64
    %p66 = scmp.eq.s32.totalorder %s19, 0
    %p67 = por %p65, %p66
    %s69 = sadd.s32 %s68, 1
    %p72 = scmp.eq.s32.totalorder %s13, 1
    %p73 = scmp.ne.s32.totalorder %s68, %s70
    %p74 = scmp.eq.s32.totalorder %s13, 0
    %p75 = por %p73, %p74
    %p76 = scmp.ne.s32.totalorder %s68, %s70
    %p77 = scmp.eq.s32.totalorder %s18, 1
    %p78 = por %p76, %p77
    %p79 = scmp.ne.s32.totalorder %s70, %s71
    %p80 = scmp.eq.s32.totalorder %s18, 0
    %p81 = por %p79, %p80
    %p82 = scmp.ne.s32.totalorder %s70, %s71
    %p83 = scmp.eq.s32.totalorder %s19, 1
    %p84 = por %p82, %p83
    %p86 = scmp.ne.s32.totalorder %s71, %s85
    %p87 = scmp.eq.s32.totalorder %s19, 0
    %p88 = por %p86, %p87
    %s90 = sadd.s32 %s89, 1
    %p93 = scmp.eq.s32.totalorder %s13, 1
    %p94 = scmp.ne.s32.totalorder %s89, %s91
    %p95 = scmp.eq.s32.totalorder %s13, 0
    %p96 = por %p94, %p95
    %p97 = scmp.ne.s32.totalorder %s89, %s91
    %p98 = scmp.eq.s32.totalorder %s18, 1
    %p99 = por %p97, %p98
    %p100 = scmp.ne.s32.totalorder %s91, %s92
    %p101 = scmp.eq.s32.totalorder %s18, 0
    %p102 = por %p100, %p101
    %p103 = scmp.ne.s32.totalorder %s91, %s92
    %p104 = scmp.eq.s32.totalorder %s19, 1
    %p105 = por %p103, %p104
    %p107 = scmp.ne.s32.totalorder %s92, %s106
    %p108 = scmp.eq.s32.totalorder %s19, 0
    %p109 = por %p107, %p108
    %s111 = sadd.s32 %s110, 1
    %p114 = scmp.eq.s32.totalorder %s13, 1
    %p115 = scmp.ne.s32.totalorder %s110, %s112
    %p116 = scmp.eq.s32.totalorder %s13, 0
    %p117 = por %p115, %p116
    %p118 = scmp.ne.s32.totalorder %s110, %s112
    %p119 = scmp.eq.s32.totalorder %s18, 1
    %p120 = por %p118, %p119
    %p121 = scmp.ne.s32.totalorder %s112, %s113
    %p122 = scmp.eq.s32.totalorder %s18, 0
    %p123 = por %p121, %p122
    %p124 = scmp.ne.s32.totalorder %s112, %s113
    %p125 = scmp.eq.s32.totalorder %s19, 1
    %p126 = por %p124, %p125
    %p128 = scmp.ne.s32.totalorder %s113, %s127
    %p129 = scmp.eq.s32.totalorder %s19, 0
    %p130 = por %p128, %p129
    %s132 = sadd.s32 %s131, 1
    %p135 = scmp.eq.s32.totalorder %s13, 1
    %p136 = scmp.ne.s32.totalorder %s131, %s133
    %p137 = scmp.eq.s32.totalorder %s13, 0
    %p138 = por %p136, %p137
    %p139 = scmp.ne.s32.totalorder %s131, %s133
    %p140 = scmp.eq.s32.totalorder %s18, 1
    %p141 = por %p139, %p140
    %p142 = scmp.ne.s32.totalorder %s133, %s134
    %p143 = scmp.eq.s32.totalorder %s18, 0
    %p144 = por %p142, %p143
    %p145 = scmp.ne.s32.totalorder %s133, %s134
    %p146 = scmp.eq.s32.totalorder %s19, 1
    %p147 = por %p145, %p146
    %p149 = scmp.ne.s32.totalorder %s134, %s148
    %p150 = scmp.eq.s32.totalorder %s19, 0
    %p151 = por %p149, %p150
    %s153 = sadd.s32 %s152, 1
    %p156 = scmp.eq.s32.totalorder %s13, 1
    %p157 = scmp.ne.s32.totalorder %s152, %s154
    %p158 = scmp.eq.s32.totalorder %s13, 0
    %p159 = por %p157, %p158
    %p160 = scmp.ne.s32.totalorder %s152, %s154
    %p161 = scmp.eq.s32.totalorder %s18, 1
    %p162 = por %p160, %p161
    %p163 = scmp.ne.s32.totalorder %s154, %s155
    %p164 = scmp.eq.s32.totalorder %s18, 0
    %p165 = por %p163, %p164
    %p166 = scmp.ne.s32.totalorder %s154, %s155
    %p167 = scmp.eq.s32.totalorder %s19, 1
    %p168 = por %p166, %p167
    %p170 = scmp.ne.s32.totalorder %s155, %s169
    %p171 = scmp.eq.s32.totalorder %s19, 0
    %p172 = por %p170, %p171
    %s173 = ssub.s32 %s13, %s20
    %p174 = scmp.eq.s32.totalorder %s173, 0
    %s176 = sadd.s32 %s175, 1
    %s177 = scalar_select %p174, %s175, %s176
    %p180 = pneg %p174
    %p181 = scmp.eq.s32.totalorder %s13, 1
    %p182 = por %p180, %p181
    %p183 = scmp.ne.s32.totalorder %s175, %s178
    %p184 = scmp.eq.s32.totalorder %s13, 0
    %p185 = por %p183, %p184
    %p186 = scmp.ne.s32.totalorder %s175, %s178
    %p187 = scmp.eq.s32.totalorder %s18, 1
    %p188 = por %p186, %p187
    %p189 = scmp.ne.s32.totalorder %s178, %s179
    %p190 = scmp.eq.s32.totalorder %s18, 0
    %p191 = por %p189, %p190
    %p192 = scmp.ne.s32.totalorder %s178, %s179
    %p193 = scmp.eq.s32.totalorder %s19, 1
    %p194 = por %p192, %p193
    %p196 = scmp.ne.s32.totalorder %s179, %s195
    %p197 = scmp.eq.s32.totalorder %s19, 0
    %p198 = por %p196, %p197
    %p199 = scmp.le.s32.totalorder 1, %s13
    %p200 = scmp.lt.s32.totalorder %s13, 3
    %p201 = pnand %p199, %p200
    %p202 = pneg %p201
    // Predicated region
    $region9: #{_lambda_.1} parent=5 // pred_check
      _
    $region10: #{_lambda_.1} parent=5 // pred_check_branch
      %204 = sbr.rel (%p201) target = $region12
    $region11: #{_lambda_.1} parent=5 // pred_region
      %s205 = ssub.s32 %s13, 1
      // Predicated region
      $region13: #{_lambda_.1} parent=11 // pred_check
        %p206 = pneg %p60
      $region14: #{_lambda_.1} parent=11 // pred_check_branch
        %208 = sbr.rel (%p206) target = $region16
      $region15: #{_lambda_.1} parent=11 // pred_region
        _
      $region16: #{_lambda_.1} parent=11 // pred_fallthru
        _
      // Predicated region
      $region17: #{_lambda_.1} parent=11 // pred_check
        %p209 = pneg %p81
      $region18: #{_lambda_.1} parent=11 // pred_check_branch
        %211 = sbr.rel (%p209) target = $region20
      $region19: #{_lambda_.1} parent=11 // pred_region
        _
      $region20: #{_lambda_.1} parent=11 // pred_fallthru
        _
      // Predicated region
      $region21: #{_lambda_.1} parent=11 // pred_check
        %p212 = pneg %p102
      $region22: #{_lambda_.1} parent=11 // pred_check_branch
        %214 = sbr.rel (%p212) target = $region24
      $region23: #{_lambda_.1} parent=11 // pred_region
        _
      $region24: #{_lambda_.1} parent=11 // pred_fallthru
        _
      // Predicated region
      $region25: #{_lambda_.1} parent=11 // pred_check
        %p215 = pneg %p123
      $region26: #{_lambda_.1} parent=11 // pred_check_branch
        %217 = sbr.rel (%p215) target = $region28
      $region27: #{_lambda_.1} parent=11 // pred_region
        _
      $region28: #{_lambda_.1} parent=11 // pred_fallthru
        _
      // Predicated region
      $region29: #{_lambda_.1} parent=11 // pred_check
        %p218 = pneg %p144
      $region30: #{_lambda_.1} parent=11 // pred_check_branch
        %220 = sbr.rel (%p218) target = $region32
      $region31: #{_lambda_.1} parent=11 // pred_region
        _
      $region32: #{_lambda_.1} parent=11 // pred_fallthru
        _
      // Predicated region
      $region33: #{_lambda_.1} parent=11 // pred_check
        %p221 = pneg %p165
      $region34: #{_lambda_.1} parent=11 // pred_check_branch
        %223 = sbr.rel (%p221) target = $region36
      $region35: #{_lambda_.1} parent=11 // pred_region
        _
      $region36: #{_lambda_.1} parent=11 // pred_fallthru
        _
    $region12: #{_lambda_.1} parent=5 // pred_fallthru
      _
    %p224 = scmp.lt.s32.totalorder %s13, 2
    // Predicated region
    $region37: #{_lambda_.1} parent=5 // pred_check
      %p225 = pneg %p224
    $region38: #{_lambda_.1} parent=5 // pred_check_branch
      %227 = sbr.rel (%p225) target = $region40
    $region39: #{_lambda_.1} parent=5 // pred_region
      // Predicated region
      $region41: #{_lambda_.1} parent=39 // pred_check
        %p228 = pneg %p33
      $region42: #{_lambda_.1} parent=39 // pred_check_branch
        %230 = sbr.rel (%p228) target = $region44
      $region43: #{_lambda_.1} parent=39 // pred_region
        %s231 = smul.u32 2, %s13
        %p232 = scmp.lt.s32.totalorder %s231, 3
        %s233 = scalar_select %p232, %s231, 3
        %s234 = smul.addr %s233, 8
        %s235 = scalar_lea.vmem %s0, %s234
        %s236 = smul.u32 2, %s13
      $region44: #{_lambda_.1} parent=39 // pred_fallthru
        _
    $region40: #{_lambda_.1} parent=5 // pred_fallthru
      _
    %p237 = scmp.le.s32.totalorder 1, %s13
    %p238 = scmp.lt.s32.totalorder %s13, 3
    %p239 = pnand %p237, %p238
    %p240 = pneg %p239
    // Predicated region
    $region45: #{_lambda_.1} parent=5 // pred_check
      _
    $region46: #{_lambda_.1} parent=5 // pred_check_branch
      %242 = sbr.rel (%p239) target = $region48
    $region47: #{_lambda_.1} parent=5 // pred_region
      %s243 = ssub.s32 %s13, 1
      %s244 = smul.u32 2, %s18
      %p245 = scmp.lt.s32.totalorder %s244, 3
      %s246 = scalar_select %p245, %s244, 3
      %s247 = smul.addr %s246, 8
      %s248 = scalar_lea.vmem %s0, %s247
      %p249 = pneg %p39
      %p250 = pneg %p36
      %p251 = pneg %p60
      %p252 = pneg %p57
      %p253 = pneg %p81
      %p254 = pneg %p78
      %p255 = pneg %p102
      %p256 = pneg %p99
      %p257 = pneg %p123
      %p258 = pneg %p120
      %p259 = pneg %p144
      %p260 = pneg %p141
      %p261 = pneg %p165
      %p262 = pneg %p162
      %p263 = pneg %p191
      %p264 = pneg %p188
      %s265 = smul.u32 2, %s18
      %p266 = scmp.lt.s32.totalorder %s265, 3
      %s267 = scalar_select %p266, %s265, 3
      %s268 = smul.addr %s267, 4
      %s269 = scalar_lea.vmem %s7, %s268
      %s270 = smul.u32 2, %s18
      %p271 = scmp.lt.s32.totalorder %s270, 3
      %s272 = scalar_select %p271, %s270, 3
      %s273 = smul.addr %s272, 8
      %s274 = scalar_lea.vmem %s0, %s273
      %s275 = smul.u32 2, %s18
      %s276 = smul.u32 2, %s18
      %p277 = scmp.lt.s32.totalorder %s276, 3
      %s278 = scalar_select %p277, %s276, 3
      %s279 = smul.addr %s278, 4
      %s280 = scalar_lea.vmem %s7, %s279
      %s281 = smul.u32 2, %s18
      %v282 = vld [vmem:[%s1] sm:$0xff]
      %v283 = vld [vmem:[%s1 + $0x8] sm:$0xff]
      %v284 = vld [vmem:[%s1 + $0x10] sm:$0x1]
      %v285 = vld [vmem:[%s1 + $0x18] sm:$0x1]
      %v286 = vld [vmem:[%s274] sm:$0xff]
      %v287 = vld [vmem:[%s274 + $0x8] sm:$0xff]
      %v288 = vld [vmem:[%s2] sm:$0xff]
      %289 = vrot.lane.b32.xlu0 %v286, 17
      %v290 = vpop.permute.xlu0 %289
      %291 = vrot.lane.b32.xlu0 %v287, 17
      %v292 = vpop.permute.xlu0 %291
      %v293 = vlaneseq
      %v294 = vand.u32 %v293, 127
      %vm295 = vcmp.lt.s32.totalorder %v294, 17
      %v296 = vsel %vm295, %v290, %v292
      %v297 = vsel %vm295, %v292, %v290
      %v298 = vlaneseq
      %v299 = vshrl.u32 %v298, 7
      %v300 = vsub.s32 0, %v299
      %v301 = vrot.slane %v282, %v300
      %v302 = vlaneseq
      %v303 = vshrl.u32 %v302, 7
      %v304 = vsub.s32 0, %v303
      %v305 = vrot.slane %v283, %v304
      %v306 = vmul.f32 %v297, %v301
      %v307 = vmul.f32 %v296, %v305
      %308 = vrot.lane.b32.xlu0 %v286, 16
      %v309 = vpop.permute.xlu0 %308
      %310 = vrot.lane.b32.xlu0 %v287, 16
      %v311 = vpop.permute.xlu0 %310
      %vm312 = vcmp.lt.s32.totalorder %v294, 16
      %v313 = vsel %vm312, %v309, %v311
      %v314 = vsel %vm312, %v311, %v309
      %v315 = vlaneseq
      %v316 = vshrl.u32 %v315, 7
      %v317 = vsub.s32 1, %v316
      %v318 = vrot.slane %v282, %v317
      %v319 = vlaneseq
      %v320 = vshrl.u32 %v319, 7
      %v321 = vsub.s32 1, %v320
      %v322 = vrot.slane %v283, %v321
      %v323 = vmul.f32 %v314, %v318
      %v324 = vmul.f32 %v313, %v322
      %325 = vrot.lane.b32.xlu0 %v286, 15
      %v326 = vpop.permute.xlu0 %325
      %327 = vrot.lane.b32.xlu0 %v287, 15
      %v328 = vpop.permute.xlu0 %327
      %vm329 = vcmp.lt.s32.totalorder %v294, 15
      %v330 = vsel %vm329, %v326, %v328
      %v331 = vsel %vm329, %v328, %v326
      %v332 = vlaneseq
      %v333 = vshrl.u32 %v332, 7
      %v334 = vsub.s32 2, %v333
      %v335 = vrot.slane %v282, %v334
      %v336 = vlaneseq
      %v337 = vshrl.u32 %v336, 7
      %v338 = vsub.s32 2, %v337
      %v339 = vrot.slane %v283, %v338
      %v340 = vmul.f32 %v331, %v335
      %v341 = vmul.f32 %v330, %v339
      %342 = vrot.lane.b32.xlu0 %v286, 1
      %v343 = vpop.permute.xlu0 %342
      %344 = vrot.lane.b32.xlu0 %v287, 1
      %v345 = vpop.permute.xlu0 %344
      %vm346 = vcmp.lt.s32.totalorder %v294, 1
      %v347 = vsel %vm346, %v343, %v345
      %v348 = vsel %vm346, %v345, %v343
      %v349 = vlaneseq
      %v350 = vshrl.u32 %v349, 7
      %v351 = vsub.s32 3, %v350
      %v352 = vrot.slane %v282, %v351
      %v353 = vlaneseq
      %v354 = vshrl.u32 %v353, 7
      %v355 = vsub.s32 3, %v354
      %v356 = vrot.slane %v283, %v355
      %v357 = vmul.f32 %v348, %v352
      %v358 = vmul.f32 %v347, %v356
      %359 = vrot.lane.b32.xlu0 %v286, 127
      %v360 = vpop.permute.xlu0 %359
      %361 = vrot.lane.b32.xlu0 %v287, 127
      %v362 = vpop.permute.xlu0 %361
      %vm363 = vcmp.lt.s32.totalorder %v294, 127
      %v364 = vsel %vm363, %v360, %v362
      %v365 = vsel %vm363, %v362, %v360
      %v366 = vlaneseq
      %v367 = vshrl.u32 %v366, 7
      %v368 = vsub.s32 5, %v367
      %v369 = vrot.slane %v282, %v368
      %v370 = vlaneseq
      %v371 = vshrl.u32 %v370, 7
      %v372 = vsub.s32 5, %v371
      %v373 = vrot.slane %v283, %v372
      %v374 = vmul.f32 %v364, %v369
      %v375 = vmul.f32 %v365, %v373
      %376 = vrot.lane.b32.xlu0 %v286, 113
      %v377 = vpop.permute.xlu0 %376
      %378 = vrot.lane.b32.xlu0 %v287, 113
      %v379 = vpop.permute.xlu0 %378
      %vm380 = vcmp.lt.s32.totalorder %v294, 113
      %v381 = vsel %vm380, %v377, %v379
      %v382 = vsel %vm380, %v379, %v377
      %v383 = vlaneseq
      %v384 = vshrl.u32 %v383, 7
      %v385 = vsub.s32 6, %v384
      %v386 = vrot.slane %v282, %v385
      %v387 = vlaneseq
      %v388 = vshrl.u32 %v387, 7
      %v389 = vsub.s32 6, %v388
      %v390 = vrot.slane %v283, %v389
      %v391 = vmul.f32 %v381, %v386
      %v392 = vmul.f32 %v382, %v390
      %393 = vrot.lane.b32.xlu0 %v286, 112
      %v394 = vpop.permute.xlu0 %393
      %395 = vrot.lane.b32.xlu0 %v287, 112
      %v396 = vpop.permute.xlu0 %395
      %vm397 = vcmp.lt.s32.totalorder %v294, 112
      %v398 = vsel %vm397, %v394, %v396
      %v399 = vsel %vm397, %v396, %v394
      %v400 = vlaneseq
      %v401 = vshrl.u32 %v400, 7
      %v402 = vsub.s32 7, %v401
      %v403 = vrot.slane %v282, %v402
      %v404 = vlaneseq
      %v405 = vshrl.u32 %v404, 7
      %v406 = vsub.s32 7, %v405
      %v407 = vrot.slane %v283, %v406
      %v408 = vmul.f32 %v398, %v403
      %v409 = vmul.f32 %v399, %v407
      %410 = vrot.lane.b32.xlu0 %v286, 111
      %v411 = vpop.permute.xlu0 %410
      %412 = vrot.lane.b32.xlu0 %v287, 111
      %v413 = vpop.permute.xlu0 %412
      %vm414 = vcmp.lt.s32.totalorder %v294, 111
      %v415 = vsel %vm414, %v411, %v413
      %v416 = vsel %vm414, %v413, %v411
      %v417 = vlaneseq
      %v418 = vshrl.u32 %v417, 7
      %v419 = vsub.s32 0, %v418
      %v420 = vrot.slane %v284, %v419
      %v421 = vlaneseq
      %v422 = vshrl.u32 %v421, 7
      %v423 = vsub.s32 0, %v422
      %v424 = vrot.slane %v285, %v423
      %v425 = vmul.f32 %v415, %v420
      %v426 = vmul.f32 %v416, %v424
      %vm427 = vcmask 596992
      %v429 = vsel %vm427, %v288, 0
      %vm431 = vcmask 1040384
      %v433 = vsel %vm431, 1.0, 0
      %435 = vmatprep.subr.mxu0 0.0
      %436 = vmatpush1.msra.mxu0 0.0
      %437 = vmatprep.subr.mxu0 0.0
      %438 = vmatpush1.msra.mxu0 0.0
      %439 = vmatprep.subr.mxu0 0.0
      %440 = vmatpush1.msra.mxu0 0.0
      %441 = vmatprep.subr.mxu0 0.0
      %442 = vmatpush1.msra.mxu0 0.0
      %443 = vmatprep.subr.mxu0 0.0
      %444 = vmatpush1.msra.mxu0 0.0
      %445 = vmatprep.subr.mxu0 0.0
      %446 = vmatpush1.msra.mxu0 0.0
      %447 = vmatprep.subr.mxu0 %v433
      %448 = vmatpush1.msra.mxu0 %v433
      %449 = vmatprep.subr.mxu0 %v426
      %450 = vmatpush1.msra.mxu0 %v425
      %451 = vmatprep.subr.mxu0 %v409
      %452 = vmatpush1.msra.mxu0 %v408
      %453 = vmatprep.subr.mxu0 %v392
      %454 = vmatpush1.msra.mxu0 %v391
      %455 = vmatprep.subr.mxu0 %v375
      %456 = vmatpush1.msra.mxu0 %v374
      %457 = vmatprep.subr.mxu0 %v287
      %458 = vmatpush1.msra.mxu0 %v286
      %459 = vmatprep.subr.mxu0 %v358
      %460 = vmatpush1.msra.mxu0 %v357
      %461 = vmatprep.subr.mxu0 %v341
      %462 = vmatpush1.msra.mxu0 %v340
      %463 = vmatprep.subr.mxu0 %v324
      %464 = vmatpush1.msra.mxu0 %v323
      %465 = vmatprep.subr.mxu0 %v307
      %466 = vmatpush1.msra.mxu0 %v306
      %467 = vmatprep.subr.mxu0 0.0
      %468 = vmatpush2.msra.mxu0 0.0
      %469 = vmatprep.subr.mxu0 0.0
      %470 = vmatpush2.msra.mxu0 0.0
      %471 = vmatprep.subr.mxu0 0.0
      %472 = vmatpush2.msra.mxu0 0.0
      %473 = vmatprep.subr.mxu0 0.0
      %474 = vmatpush2.msra.mxu0 0.0
      %475 = vmatprep.subr.mxu0 0.0
      %476 = vmatpush2.msra.mxu0 0.0
      %477 = vmatprep.subr.mxu0 0.0
      %478 = vmatpush2.msra.mxu0 0.0
      %479 = vmatprep.subr.mxu0 0.0
      %480 = vmatpush2.msra.mxu0 0.0
      %481 = vmatprep.subr.mxu0 0.0
      %482 = vmatpush2.msra.mxu0 0.0
      %483 = vmatprep.subr.mxu0 0.0
      %484 = vmatpush2.msra.mxu0 0.0
      %485 = vmatprep.subr.mxu0 0.0
      %486 = vmatpush2.msra.mxu0 0.0
      %487 = vmatprep.subr.mxu0 0.0
      %488 = vmatpush2.msra.mxu0 0.0
      %489 = vmatprep.subr.mxu0 0.0
      %490 = vmatpush2.msra.mxu0 0.0
      %491 = vmatprep.subr.mxu0 0.0
      %492 = vmatpush2.msra.mxu0 0.0
      %493 = vmatprep.subr.mxu0 0.0
      %494 = vmatpush2.msra.mxu0 0.0
      %495 = vmatprep.subr.mxu0 0.0
      %496 = vmatpush2.msra.mxu0 0.0
      %497 = vmatprep.subr.mxu0 0.0
      %498 = vmatpush2.msra.mxu0 0.0
      %499 = vmatprep.mubr.f32.mxu0 0.0
      %500 = vmatmul.mubr.f32.gmra.mxu0 %v429
      %v501 = vpop.f32.mrf.mxu0
      %v502 = vadd.f32 0.0, %v501
      %v503 = vpop.f32.mrf.mxu0
      %v504 = vadd.f32 0.0, %v503
      %505 = vdwg.mxu0
      %v506 = vmax.f32 %v502, 0.0
      %v507 = vmax.f32 %v504, 0.0
      %v508 = vld [vmem:[%s3] sm:$0xff]
      %509 = vrot.lane.b32.xlu0 %v506, 17
      %v510 = vpop.permute.xlu0 %509
      %511 = vrot.lane.b32.xlu0 %v507, 17
      %v512 = vpop.permute.xlu0 %511
      %v513 = vsel %vm295, %v510, %v512
      %v514 = vsel %vm295, %v512, %v510
      %v515 = vmul.f32 %v514, %v301
      %v516 = vmul.f32 %v513, %v305
      %517 = vrot.lane.b32.xlu0 %v506, 16
      %v518 = vpop.permute.xlu0 %517
      %519 = vrot.lane.b32.xlu0 %v507, 16
      %v520 = vpop.permute.xlu0 %519
      %v521 = vsel %vm312, %v518, %v520
      %v522 = vsel %vm312, %v520, %v518
      %v523 = vmul.f32 %v522, %v318
      %v524 = vmul.f32 %v521, %v322
      %525 = vrot.lane.b32.xlu0 %v506, 15
      %v526 = vpop.permute.xlu0 %525
      %527 = vrot.lane.b32.xlu0 %v507, 15
      %v528 = vpop.permute.xlu0 %527
      %v529 = vsel %vm329, %v526, %v528
      %v530 = vsel %vm329, %v528, %v526
      %v531 = vmul.f32 %v530, %v335
      %v532 = vmul.f32 %v529, %v339
      %533 = vrot.lane.b32.xlu0 %v506, 1
      %v534 = vpop.permute.xlu0 %533
      %535 = vrot.lane.b32.xlu0 %v507, 1
      %v536 = vpop.permute.xlu0 %535
      %v537 = vsel %vm346, %v534, %v536
      %v538 = vsel %vm346, %v536, %v534
      %v539 = vmul.f32 %v538, %v352
      %v540 = vmul.f32 %v537, %v356
      %541 = vrot.lane.b32.xlu0 %v506, 127
      %v542 = vpop.permute.xlu0 %541
      %543 = vrot.lane.b32.xlu0 %v507, 127
      %v544 = vpop.permute.xlu0 %543
      %v545 = vsel %vm363, %v542, %v544
      %v546 = vsel %vm363, %v544, %v542
      %v547 = vmul.f32 %v545, %v369
      %v548 = vmul.f32 %v546, %v373
      %549 = vrot.lane.b32.xlu0 %v506, 113
      %v550 = vpop.permute.xlu0 %549
      %551 = vrot.lane.b32.xlu0 %v507, 113
      %v552 = vpop.permute.xlu0 %551
      %v553 = vsel %vm380, %v550, %v552
      %v554 = vsel %vm380, %v552, %v550
      %v555 = vmul.f32 %v553, %v386
      %v556 = vmul.f32 %v554, %v390
      %557 = vrot.lane.b32.xlu0 %v506, 112
      %v558 = vpop.permute.xlu0 %557
      %559 = vrot.lane.b32.xlu0 %v507, 112
      %v560 = vpop.permute.xlu0 %559
      %v561 = vsel %vm397, %v558, %v560
      %v562 = vsel %vm397, %v560, %v558
      %v563 = vmul.f32 %v561, %v403
      %v564 = vmul.f32 %v562, %v407
      %565 = vrot.lane.b32.xlu0 %v506, 111
      %v566 = vpop.permute.xlu0 %565
      %567 = vrot.lane.b32.xlu0 %v507, 111
      %v568 = vpop.permute.xlu0 %567
      %v569 = vsel %vm414, %v566, %v568
      %v570 = vsel %vm414, %v568, %v566
      %v571 = vmul.f32 %v569, %v420
      %v572 = vmul.f32 %v570, %v424
      %v574 = vsel %vm427, %v508, 0
      %576 = vmatprep.subr.mxu0 0.0
      %577 = vmatpush1.msra.mxu0 0.0
      %578 = vmatprep.subr.mxu0 0.0
      %579 = vmatpush1.msra.mxu0 0.0
      %580 = vmatprep.subr.mxu0 0.0
      %581 = vmatpush1.msra.mxu0 0.0
      %582 = vmatprep.subr.mxu0 0.0
      %583 = vmatpush1.msra.mxu0 0.0
      %584 = vmatprep.subr.mxu0 0.0
      %585 = vmatpush1.msra.mxu0 0.0
      %586 = vmatprep.subr.mxu0 0.0
      %587 = vmatpush1.msra.mxu0 0.0
      %588 = vmatprep.subr.mxu0 %v433
      %589 = vmatpush1.msra.mxu0 %v433
      %590 = vmatprep.subr.mxu0 %v572
      %591 = vmatpush1.msra.mxu0 %v571
      %592 = vmatprep.subr.mxu0 %v564
      %593 = vmatpush1.msra.mxu0 %v563
      %594 = vmatprep.subr.mxu0 %v556
      %595 = vmatpush1.msra.mxu0 %v555
      %596 = vmatprep.subr.mxu0 %v548
      %597 = vmatpush1.msra.mxu0 %v547
      %598 = vmatprep.subr.mxu0 %v507
      %599 = vmatpush1.msra.mxu0 %v506
      %600 = vmatprep.subr.mxu0 %v540
      %601 = vmatpush1.msra.mxu0 %v539
      %602 = vmatprep.subr.mxu0 %v532
      %603 = vmatpush1.msra.mxu0 %v531
      %604 = vmatprep.subr.mxu0 %v524
      %605 = vmatpush1.msra.mxu0 %v523
      %606 = vmatprep.subr.mxu0 %v516
      %607 = vmatpush1.msra.mxu0 %v515
      %608 = vmatprep.subr.mxu0 0.0
      %609 = vmatpush2.msra.mxu0 0.0
      %610 = vmatprep.subr.mxu0 0.0
      %611 = vmatpush2.msra.mxu0 0.0
      %612 = vmatprep.subr.mxu0 0.0
      %613 = vmatpush2.msra.mxu0 0.0
      %614 = vmatprep.subr.mxu0 0.0
      %615 = vmatpush2.msra.mxu0 0.0
      %616 = vmatprep.subr.mxu0 0.0
      %617 = vmatpush2.msra.mxu0 0.0
      %618 = vmatprep.subr.mxu0 0.0
      %619 = vmatpush2.msra.mxu0 0.0
      %620 = vmatprep.subr.mxu0 0.0
      %621 = vmatpush2.msra.mxu0 0.0
      %622 = vmatprep.subr.mxu0 0.0
      %623 = vmatpush2.msra.mxu0 0.0
      %624 = vmatprep.subr.mxu0 0.0
      %625 = vmatpush2.msra.mxu0 0.0
      %626 = vmatprep.subr.mxu0 0.0
      %627 = vmatpush2.msra.mxu0 0.0
      %628 = vmatprep.subr.mxu0 0.0
      %629 = vmatpush2.msra.mxu0 0.0
      %630 = vmatprep.subr.mxu0 0.0
      %631 = vmatpush2.msra.mxu0 0.0
      %632 = vmatprep.subr.mxu0 0.0
      %633 = vmatpush2.msra.mxu0 0.0
      %634 = vmatprep.subr.mxu0 0.0
      %635 = vmatpush2.msra.mxu0 0.0
      %636 = vmatprep.subr.mxu0 0.0
      %637 = vmatpush2.msra.mxu0 0.0
      %638 = vmatprep.subr.mxu0 0.0
      %639 = vmatpush2.msra.mxu0 0.0
      %640 = vmatprep.mubr.f32.mxu0 0.0
      %641 = vmatmul.mubr.f32.gmra.mxu0 %v574
      %v642 = vpop.f32.mrf.mxu0
      %v643 = vadd.f32 0.0, %v642
      %v644 = vpop.f32.mrf.mxu0
      %v645 = vadd.f32 0.0, %v644
      %646 = vdwg.mxu0
      %v647 = vmax.f32 %v643, 0.0
      %v648 = vmax.f32 %v645, 0.0
      %s649 = scalar_lea.vmem %s3, 8
      %v650 = vld [vmem:[%s649] sm:$0xff]
      %651 = vrot.lane.b32.xlu0 %v647, 17
      %v652 = vpop.permute.xlu0 %651
      %653 = vrot.lane.b32.xlu0 %v648, 17
      %v654 = vpop.permute.xlu0 %653
      %v655 = vsel %vm295, %v652, %v654
      %v656 = vsel %vm295, %v654, %v652
      %v657 = vmul.f32 %v656, %v301
      %v658 = vmul.f32 %v655, %v305
      %659 = vrot.lane.b32.xlu0 %v647, 16
      %v660 = vpop.permute.xlu0 %659
      %661 = vrot.lane.b32.xlu0 %v648, 16
      %v662 = vpop.permute.xlu0 %661
      %v663 = vsel %vm312, %v660, %v662
      %v664 = vsel %vm312, %v662, %v660
      %v665 = vmul.f32 %v664, %v318
      %v666 = vmul.f32 %v663, %v322
      %667 = vrot.lane.b32.xlu0 %v647, 15
      %v668 = vpop.permute.xlu0 %667
      %669 = vrot.lane.b32.xlu0 %v648, 15
      %v670 = vpop.permute.xlu0 %669
      %v671 = vsel %vm329, %v668, %v670
      %v672 = vsel %vm329, %v670, %v668
      %v673 = vmul.f32 %v672, %v335
      %v674 = vmul.f32 %v671, %v339
      %675 = vrot.lane.b32.xlu0 %v647, 1
      %v676 = vpop.permute.xlu0 %675
      %677 = vrot.lane.b32.xlu0 %v648, 1
      %v678 = vpop.permute.xlu0 %677
      %v679 = vsel %vm346, %v676, %v678
      %v680 = vsel %vm346, %v678, %v676
      %v681 = vmul.f32 %v680, %v352
      %v682 = vmul.f32 %v679, %v356
      %683 = vrot.lane.b32.xlu0 %v647, 127
      %v684 = vpop.permute.xlu0 %683
      %685 = vrot.lane.b32.xlu0 %v648, 127
      %v686 = vpop.permute.xlu0 %685
      %v687 = vsel %vm363, %v684, %v686
      %v688 = vsel %vm363, %v686, %v684
      %v689 = vmul.f32 %v687, %v369
      %v690 = vmul.f32 %v688, %v373
      %691 = vrot.lane.b32.xlu0 %v647, 113
      %v692 = vpop.permute.xlu0 %691
      %693 = vrot.lane.b32.xlu0 %v648, 113
      %v694 = vpop.permute.xlu0 %693
      %v695 = vsel %vm380, %v692, %v694
      %v696 = vsel %vm380, %v694, %v692
      %v697 = vmul.f32 %v695, %v386
      %v698 = vmul.f32 %v696, %v390
      %699 = vrot.lane.b32.xlu0 %v647, 112
      %v700 = vpop.permute.xlu0 %699
      %701 = vrot.lane.b32.xlu0 %v648, 112
      %v702 = vpop.permute.xlu0 %701
      %v703 = vsel %vm397, %v700, %v702
      %v704 = vsel %vm397, %v702, %v700
      %v705 = vmul.f32 %v703, %v403
      %v706 = vmul.f32 %v704, %v407
      %707 = vrot.lane.b32.xlu0 %v647, 111
      %v708 = vpop.permute.xlu0 %707
      %709 = vrot.lane.b32.xlu0 %v648, 111
      %v710 = vpop.permute.xlu0 %709
      %v711 = vsel %vm414, %v708, %v710
      %v712 = vsel %vm414, %v710, %v708
      %v713 = vmul.f32 %v711, %v420
      %v714 = vmul.f32 %v712, %v424
      %v716 = vsel %vm427, %v650, 0
      %718 = vmatprep.subr.mxu0 0.0
      %719 = vmatpush1.msra.mxu0 0.0
      %720 = vmatprep.subr.mxu0 0.0
      %721 = vmatpush1.msra.mxu0 0.0
      %722 = vmatprep.subr.mxu0 0.0
      %723 = vmatpush1.msra.mxu0 0.0
      %724 = vmatprep.subr.mxu0 0.0
      %725 = vmatpush1.msra.mxu0 0.0
      %726 = vmatprep.subr.mxu0 0.0
      %727 = vmatpush1.msra.mxu0 0.0
      %728 = vmatprep.subr.mxu0 0.0
      %729 = vmatpush1.msra.mxu0 0.0
      %730 = vmatprep.subr.mxu0 %v433
      %731 = vmatpush1.msra.mxu0 %v433
      %732 = vmatprep.subr.mxu0 %v714
      %733 = vmatpush1.msra.mxu0 %v713
      %734 = vmatprep.subr.mxu0 %v706
      %735 = vmatpush1.msra.mxu0 %v705
      %736 = vmatprep.subr.mxu0 %v698
      %737 = vmatpush1.msra.mxu0 %v697
      %738 = vmatprep.subr.mxu0 %v690
      %739 = vmatpush1.msra.mxu0 %v689
      %740 = vmatprep.subr.mxu0 %v648
      %741 = vmatpush1.msra.mxu0 %v647
      %742 = vmatprep.subr.mxu0 %v682
      %743 = vmatpush1.msra.mxu0 %v681
      %744 = vmatprep.subr.mxu0 %v674
      %745 = vmatpush1.msra.mxu0 %v673
      %746 = vmatprep.subr.mxu0 %v666
      %747 = vmatpush1.msra.mxu0 %v665
      %748 = vmatprep.subr.mxu0 %v658
      %749 = vmatpush1.msra.mxu0 %v657
      %750 = vmatprep.subr.mxu0 0.0
      %751 = vmatpush2.msra.mxu0 0.0
      %752 = vmatprep.subr.mxu0 0.0
      %753 = vmatpush2.msra.mxu0 0.0
      %754 = vmatprep.subr.mxu0 0.0
      %755 = vmatpush2.msra.mxu0 0.0
      %756 = vmatprep.subr.mxu0 0.0
      %757 = vmatpush2.msra.mxu0 0.0
      %758 = vmatprep.subr.mxu0 0.0
      %759 = vmatpush2.msra.mxu0 0.0
      %760 = vmatprep.subr.mxu0 0.0
      %761 = vmatpush2.msra.mxu0 0.0
      %762 = vmatprep.subr.mxu0 0.0
      %763 = vmatpush2.msra.mxu0 0.0
      %764 = vmatprep.subr.mxu0 0.0
      %765 = vmatpush2.msra.mxu0 0.0
      %766 = vmatprep.subr.mxu0 0.0
      %767 = vmatpush2.msra.mxu0 0.0
      %768 = vmatprep.subr.mxu0 0.0
      %769 = vmatpush2.msra.mxu0 0.0
      %770 = vmatprep.subr.mxu0 0.0
      %771 = vmatpush2.msra.mxu0 0.0
      %772 = vmatprep.subr.mxu0 0.0
      %773 = vmatpush2.msra.mxu0 0.0
      %774 = vmatprep.subr.mxu0 0.0
      %775 = vmatpush2.msra.mxu0 0.0
      %776 = vmatprep.subr.mxu0 0.0
      %777 = vmatpush2.msra.mxu0 0.0
      %778 = vmatprep.subr.mxu0 0.0
      %779 = vmatpush2.msra.mxu0 0.0
      %780 = vmatprep.subr.mxu0 0.0
      %781 = vmatpush2.msra.mxu0 0.0
      %782 = vmatprep.mubr.f32.mxu0 0.0
      %783 = vmatmul.mubr.f32.gmra.mxu0 %v716
      %v784 = vpop.f32.mrf.mxu0
      %v785 = vadd.f32 %v506, %v784
      %v786 = vpop.f32.mrf.mxu0
      %v787 = vadd.f32 %v507, %v786
      %788 = vdwg.mxu0
      %s789 = scalar_lea.vmem %s3, 16
      %v790 = vld [vmem:[%s789] sm:$0xff]
      %791 = vrot.lane.b32.xlu0 %v785, 17
      %v792 = vpop.permute.xlu0 %791
      %793 = vrot.lane.b32.xlu0 %v787, 17
      %v794 = vpop.permute.xlu0 %793
      %v795 = vsel %vm295, %v792, %v794
      %v796 = vsel %vm295, %v794, %v792
      %v797 = vmul.f32 %v796, %v301
      %v798 = vmul.f32 %v795, %v305
      %799 = vrot.lane.b32.xlu0 %v785, 16
      %v800 = vpop.permute.xlu0 %799
      %801 = vrot.lane.b32.xlu0 %v787, 16
      %v802 = vpop.permute.xlu0 %801
      %v803 = vsel %vm312, %v800, %v802
      %v804 = vsel %vm312, %v802, %v800
      %v805 = vmul.f32 %v804, %v318
      %v806 = vmul.f32 %v803, %v322
      %807 = vrot.lane.b32.xlu0 %v785, 15
      %v808 = vpop.permute.xlu0 %807
      %809 = vrot.lane.b32.xlu0 %v787, 15
      %v810 = vpop.permute.xlu0 %809
      %v811 = vsel %vm329, %v808, %v810
      %v812 = vsel %vm329, %v810, %v808
      %v813 = vmul.f32 %v812, %v335
      %v814 = vmul.f32 %v811, %v339
      %815 = vrot.lane.b32.xlu0 %v785, 1
      %v816 = vpop.permute.xlu0 %815
      %817 = vrot.lane.b32.xlu0 %v787, 1
      %v818 = vpop.permute.xlu0 %817
      %v819 = vsel %vm346, %v816, %v818
      %v820 = vsel %vm346, %v818, %v816
      %v821 = vmul.f32 %v820, %v352
      %v822 = vmul.f32 %v819, %v356
      %823 = vrot.lane.b32.xlu0 %v785, 127
      %v824 = vpop.permute.xlu0 %823
      %825 = vrot.lane.b32.xlu0 %v787, 127
      %v826 = vpop.permute.xlu0 %825
      %v827 = vsel %vm363, %v824, %v826
      %v828 = vsel %vm363, %v826, %v824
      %v829 = vmul.f32 %v827, %v369
      %v830 = vmul.f32 %v828, %v373
      %831 = vrot.lane.b32.xlu0 %v785, 113
      %v832 = vpop.permute.xlu0 %831
      %833 = vrot.lane.b32.xlu0 %v787, 113
      %v834 = vpop.permute.xlu0 %833
      %v835 = vsel %vm380, %v832, %v834
      %v836 = vsel %vm380, %v834, %v832
      %v837 = vmul.f32 %v835, %v386
      %v838 = vmul.f32 %v836, %v390
      %839 = vrot.lane.b32.xlu0 %v785, 112
      %v840 = vpop.permute.xlu0 %839
      %841 = vrot.lane.b32.xlu0 %v787, 112
      %v842 = vpop.permute.xlu0 %841
      %v843 = vsel %vm397, %v840, %v842
      %v844 = vsel %vm397, %v842, %v840
      %v845 = vmul.f32 %v843, %v403
      %v846 = vmul.f32 %v844, %v407
      %847 = vrot.lane.b32.xlu0 %v785, 111
      %v848 = vpop.permute.xlu0 %847
      %849 = vrot.lane.b32.xlu0 %v787, 111
      %v850 = vpop.permute.xlu0 %849
      %v851 = vsel %vm414, %v848, %v850
      %v852 = vsel %vm414, %v850, %v848
      %v853 = vmul.f32 %v851, %v420
      %v854 = vmul.f32 %v852, %v424
      %v856 = vsel %vm427, %v790, 0
      %858 = vmatprep.subr.mxu0 0.0
      %859 = vmatpush1.msra.mxu0 0.0
      %860 = vmatprep.subr.mxu0 0.0
      %861 = vmatpush1.msra.mxu0 0.0
      %862 = vmatprep.subr.mxu0 0.0
      %863 = vmatpush1.msra.mxu0 0.0
      %864 = vmatprep.subr.mxu0 0.0
      %865 = vmatpush1.msra.mxu0 0.0
      %866 = vmatprep.subr.mxu0 0.0
      %867 = vmatpush1.msra.mxu0 0.0
      %868 = vmatprep.subr.mxu0 0.0
      %869 = vmatpush1.msra.mxu0 0.0
      %870 = vmatprep.subr.mxu0 %v433
      %871 = vmatpush1.msra.mxu0 %v433
      %872 = vmatprep.subr.mxu0 %v854
      %873 = vmatpush1.msra.mxu0 %v853
      %874 = vmatprep.subr.mxu0 %v846
      %875 = vmatpush1.msra.mxu0 %v845
      %876 = vmatprep.subr.mxu0 %v838
      %877 = vmatpush1.msra.mxu0 %v837
      %878 = vmatprep.subr.mxu0 %v830
      %879 = vmatpush1.msra.mxu0 %v829
      %880 = vmatprep.subr.mxu0 %v787
      %881 = vmatpush1.msra.mxu0 %v785
      %882 = vmatprep.subr.mxu0 %v822
      %883 = vmatpush1.msra.mxu0 %v821
      %884 = vmatprep.subr.mxu0 %v814
      %885 = vmatpush1.msra.mxu0 %v813
      %886 = vmatprep.subr.mxu0 %v806
      %887 = vmatpush1.msra.mxu0 %v805
      %888 = vmatprep.subr.mxu0 %v798
      %889 = vmatpush1.msra.mxu0 %v797
      %890 = vmatprep.subr.mxu0 0.0
      %891 = vmatpush2.msra.mxu0 0.0
      %892 = vmatprep.subr.mxu0 0.0
      %893 = vmatpush2.msra.mxu0 0.0
      %894 = vmatprep.subr.mxu0 0.0
      %895 = vmatpush2.msra.mxu0 0.0
      %896 = vmatprep.subr.mxu0 0.0
      %897 = vmatpush2.msra.mxu0 0.0
      %898 = vmatprep.subr.mxu0 0.0
      %899 = vmatpush2.msra.mxu0 0.0
      %900 = vmatprep.subr.mxu0 0.0
      %901 = vmatpush2.msra.mxu0 0.0
      %902 = vmatprep.subr.mxu0 0.0
      %903 = vmatpush2.msra.mxu0 0.0
      %904 = vmatprep.subr.mxu0 0.0
      %905 = vmatpush2.msra.mxu0 0.0
      %906 = vmatprep.subr.mxu0 0.0
      %907 = vmatpush2.msra.mxu0 0.0
      %908 = vmatprep.subr.mxu0 0.0
      %909 = vmatpush2.msra.mxu0 0.0
      %910 = vmatprep.subr.mxu0 0.0
      %911 = vmatpush2.msra.mxu0 0.0
      %912 = vmatprep.subr.mxu0 0.0
      %913 = vmatpush2.msra.mxu0 0.0
      %914 = vmatprep.subr.mxu0 0.0
      %915 = vmatpush2.msra.mxu0 0.0
      %916 = vmatprep.subr.mxu0 0.0
      %917 = vmatpush2.msra.mxu0 0.0
      %918 = vmatprep.subr.mxu0 0.0
      %919 = vmatpush2.msra.mxu0 0.0
      %920 = vmatprep.subr.mxu0 0.0
      %921 = vmatpush2.msra.mxu0 0.0
      %922 = vmatprep.mubr.f32.mxu0 0.0
      %923 = vmatmul.mubr.f32.gmra.mxu0 %v856
      %v924 = vpop.f32.mrf.mxu0
      %v925 = vadd.f32 0.0, %v924
      %v926 = vpop.f32.mrf.mxu0
      %v927 = vadd.f32 0.0, %v926
      %928 = vdwg.mxu0
      %v929 = vmax.f32 %v925, 0.0
      %v930 = vmax.f32 %v927, 0.0
      %s931 = scalar_lea.vmem %s3, 24
      %v932 = vld [vmem:[%s931] sm:$0xff]
      %933 = vrot.lane.b32.xlu0 %v929, 17
      %v934 = vpop.permute.xlu0 %933
      %935 = vrot.lane.b32.xlu0 %v930, 17
      %v936 = vpop.permute.xlu0 %935
      %v937 = vsel %vm295, %v934, %v936
      %v938 = vsel %vm295, %v936, %v934
      %v939 = vmul.f32 %v938, %v301
      %v940 = vmul.f32 %v937, %v305
      %941 = vrot.lane.b32.xlu0 %v929, 16
      %v942 = vpop.permute.xlu0 %941
      %943 = vrot.lane.b32.xlu0 %v930, 16
      %v944 = vpop.permute.xlu0 %943
      %v945 = vsel %vm312, %v942, %v944
      %v946 = vsel %vm312, %v944, %v942
      %v947 = vmul.f32 %v946, %v318
      %v948 = vmul.f32 %v945, %v322
      %949 = vrot.lane.b32.xlu0 %v929, 15
      %v950 = vpop.permute.xlu0 %949
      %951 = vrot.lane.b32.xlu0 %v930, 15
      %v952 = vpop.permute.xlu0 %951
      %v953 = vsel %vm329, %v950, %v952
      %v954 = vsel %vm329, %v952, %v950
      %v955 = vmul.f32 %v954, %v335
      %v956 = vmul.f32 %v953, %v339
      %957 = vrot.lane.b32.xlu0 %v929, 1
      %v958 = vpop.permute.xlu0 %957
      %959 = vrot.lane.b32.xlu0 %v930, 1
      %v960 = vpop.permute.xlu0 %959
      %v961 = vsel %vm346, %v958, %v960
      %v962 = vsel %vm346, %v960, %v958
      %v963 = vmul.f32 %v962, %v352
      %v964 = vmul.f32 %v961, %v356
      %965 = vrot.lane.b32.xlu0 %v929, 127
      %v966 = vpop.permute.xlu0 %965
      %967 = vrot.lane.b32.xlu0 %v930, 127
      %v968 = vpop.permute.xlu0 %967
      %v969 = vsel %vm363, %v966, %v968
      %v970 = vsel %vm363, %v968, %v966
      %v971 = vmul.f32 %v969, %v369
      %v972 = vmul.f32 %v970, %v373
      %973 = vrot.lane.b32.xlu0 %v929, 113
      %v974 = vpop.permute.xlu0 %973
      %975 = vrot.lane.b32.xlu0 %v930, 113
      %v976 = vpop.permute.xlu0 %975
      %v977 = vsel %vm380, %v974, %v976
      %v978 = vsel %vm380, %v976, %v974
      %v979 = vmul.f32 %v977, %v386
      %v980 = vmul.f32 %v978, %v390
      %981 = vrot.lane.b32.xlu0 %v929, 112
      %v982 = vpop.permute.xlu0 %981
      %983 = vrot.lane.b32.xlu0 %v930, 112
      %v984 = vpop.permute.xlu0 %983
      %v985 = vsel %vm397, %v982, %v984
      %v986 = vsel %vm397, %v984, %v982
      %v987 = vmul.f32 %v985, %v403
      %v988 = vmul.f32 %v986, %v407
      %989 = vrot.lane.b32.xlu0 %v929, 111
      %v990 = vpop.permute.xlu0 %989
      %991 = vrot.lane.b32.xlu0 %v930, 111
      %v992 = vpop.permute.xlu0 %991
      %v993 = vsel %vm414, %v990, %v992
      %v994 = vsel %vm414, %v992, %v990
      %v995 = vmul.f32 %v993, %v420
      %v996 = vmul.f32 %v994, %v424
      %v998 = vsel %vm427, %v932, 0
      %1000 = vmatprep.subr.mxu0 0.0
      %1001 = vmatpush1.msra.mxu0 0.0
      %1002 = vmatprep.subr.mxu0 0.0
      %1003 = vmatpush1.msra.mxu0 0.0
      %1004 = vmatprep.subr.mxu0 0.0
      %1005 = vmatpush1.msra.mxu0 0.0
      %1006 = vmatprep.subr.mxu0 0.0
      %1007 = vmatpush1.msra.mxu0 0.0
      %1008 = vmatprep.subr.mxu0 0.0
      %1009 = vmatpush1.msra.mxu0 0.0
      %1010 = vmatprep.subr.mxu0 0.0
      %1011 = vmatpush1.msra.mxu0 0.0
      %1012 = vmatprep.subr.mxu0 %v433
      %1013 = vmatpush1.msra.mxu0 %v433
      %1014 = vmatprep.subr.mxu0 %v996
      %1015 = vmatpush1.msra.mxu0 %v995
      %1016 = vmatprep.subr.mxu0 %v988
      %1017 = vmatpush1.msra.mxu0 %v987
      %1018 = vmatprep.subr.mxu0 %v980
      %1019 = vmatpush1.msra.mxu0 %v979
      %1020 = vmatprep.subr.mxu0 %v972
      %1021 = vmatpush1.msra.mxu0 %v971
      %1022 = vmatprep.subr.mxu0 %v930
      %1023 = vmatpush1.msra.mxu0 %v929
      %1024 = vmatprep.subr.mxu0 %v964
      %1025 = vmatpush1.msra.mxu0 %v963
      %1026 = vmatprep.subr.mxu0 %v956
      %1027 = vmatpush1.msra.mxu0 %v955
      %1028 = vmatprep.subr.mxu0 %v948
      %1029 = vmatpush1.msra.mxu0 %v947
      %1030 = vmatprep.subr.mxu0 %v940
      %1031 = vmatpush1.msra.mxu0 %v939
      %1032 = vmatprep.subr.mxu0 0.0
      %1033 = vmatpush2.msra.mxu0 0.0
      %1034 = vmatprep.subr.mxu0 0.0
      %1035 = vmatpush2.msra.mxu0 0.0
      %1036 = vmatprep.subr.mxu0 0.0
      %1037 = vmatpush2.msra.mxu0 0.0
      %1038 = vmatprep.subr.mxu0 0.0
      %1039 = vmatpush2.msra.mxu0 0.0
      %1040 = vmatprep.subr.mxu0 0.0
      %1041 = vmatpush2.msra.mxu0 0.0
      %1042 = vmatprep.subr.mxu0 0.0
      %1043 = vmatpush2.msra.mxu0 0.0
      %1044 = vmatprep.subr.mxu0 0.0
      %1045 = vmatpush2.msra.mxu0 0.0
      %1046 = vmatprep.subr.mxu0 0.0
      %1047 = vmatpush2.msra.mxu0 0.0
      %1048 = vmatprep.subr.mxu0 0.0
      %1049 = vmatpush2.msra.mxu0 0.0
      %1050 = vmatprep.subr.mxu0 0.0
      %1051 = vmatpush2.msra.mxu0 0.0
      %1052 = vmatprep.subr.mxu0 0.0
      %1053 = vmatpush2.msra.mxu0 0.0
      %1054 = vmatprep.subr.mxu0 0.0
      %1055 = vmatpush2.msra.mxu0 0.0
      %1056 = vmatprep.subr.mxu0 0.0
      %1057 = vmatpush2.msra.mxu0 0.0
      %1058 = vmatprep.subr.mxu0 0.0
      %1059 = vmatpush2.msra.mxu0 0.0
      %1060 = vmatprep.subr.mxu0 0.0
      %1061 = vmatpush2.msra.mxu0 0.0
      %1062 = vmatprep.subr.mxu0 0.0
      %1063 = vmatpush2.msra.mxu0 0.0
      %1064 = vmatprep.mubr.f32.mxu0 0.0
      %1065 = vmatmul.mubr.f32.gmra.mxu0 %v998
      %v1066 = vpop.f32.mrf.mxu0
      %v1067 = vadd.f32 %v785, %v1066
      %v1068 = vpop.f32.mrf.mxu0
      %v1069 = vadd.f32 %v787, %v1068
      %1070 = vdwg.mxu0
      %v1071 = vld [vmem:[%s4] sm:$0xff]
      %v1072 = vld [vmem:[%s4 + $0x8] sm:$0xff]
      %1073 = vrot.lane.b32.xlu0 %v1067, 17
      %v1074 = vpop.permute.xlu0 %1073
      %1075 = vrot.lane.b32.xlu0 %v1069, 17
      %v1076 = vpop.permute.xlu0 %1075
      %v1077 = vsel %vm295, %v1074, %v1076
      %v1078 = vsel %vm295, %v1076, %v1074
      %v1079 = vmul.f32 %v1078, %v301
      %v1080 = vmul.f32 %v1077, %v305
      %1081 = vrot.lane.b32.xlu0 %v1067, 16
      %v1082 = vpop.permute.xlu0 %1081
      %1083 = vrot.lane.b32.xlu0 %v1069, 16
      %v1084 = vpop.permute.xlu0 %1083
      %v1085 = vsel %vm312, %v1082, %v1084
      %v1086 = vsel %vm312, %v1084, %v1082
      %v1087 = vmul.f32 %v1086, %v318
      %v1088 = vmul.f32 %v1085, %v322
      %1089 = vrot.lane.b32.xlu0 %v1067, 15
      %v1090 = vpop.permute.xlu0 %1089
      %1091 = vrot.lane.b32.xlu0 %v1069, 15
      %v1092 = vpop.permute.xlu0 %1091
      %v1093 = vsel %vm329, %v1090, %v1092
      %v1094 = vsel %vm329, %v1092, %v1090
      %v1095 = vmul.f32 %v1094, %v335
      %v1096 = vmul.f32 %v1093, %v339
      %1097 = vrot.lane.b32.xlu0 %v1067, 1
      %v1098 = vpop.permute.xlu0 %1097
      %1099 = vrot.lane.b32.xlu0 %v1069, 1
      %v1100 = vpop.permute.xlu0 %1099
      %v1101 = vsel %vm346, %v1098, %v1100
      %v1102 = vsel %vm346, %v1100, %v1098
      %v1103 = vmul.f32 %v1102, %v352
      %v1104 = vmul.f32 %v1101, %v356
      %1105 = vrot.lane.b32.xlu0 %v1067, 127
      %v1106 = vpop.permute.xlu0 %1105
      %1107 = vrot.lane.b32.xlu0 %v1069, 127
      %v1108 = vpop.permute.xlu0 %1107
      %v1109 = vsel %vm363, %v1106, %v1108
      %v1110 = vsel %vm363, %v1108, %v1106
      %v1111 = vmul.f32 %v1109, %v369
      %v1112 = vmul.f32 %v1110, %v373
      %1113 = vrot.lane.b32.xlu0 %v1067, 113
      %v1114 = vpop.permute.xlu0 %1113
      %1115 = vrot.lane.b32.xlu0 %v1069, 113
      %v1116 = vpop.permute.xlu0 %1115
      %v1117 = vsel %vm380, %v1114, %v1116
      %v1118 = vsel %vm380, %v1116, %v1114
      %v1119 = vmul.f32 %v1117, %v386
      %v1120 = vmul.f32 %v1118, %v390
      %1121 = vrot.lane.b32.xlu0 %v1067, 112
      %v1122 = vpop.permute.xlu0 %1121
      %1123 = vrot.lane.b32.xlu0 %v1069, 112
      %v1124 = vpop.permute.xlu0 %1123
      %v1125 = vsel %vm397, %v1122, %v1124
      %v1126 = vsel %vm397, %v1124, %v1122
      %v1127 = vmul.f32 %v1125, %v403
      %v1128 = vmul.f32 %v1126, %v407
      %1129 = vrot.lane.b32.xlu0 %v1067, 111
      %v1130 = vpop.permute.xlu0 %1129
      %1131 = vrot.lane.b32.xlu0 %v1069, 111
      %v1132 = vpop.permute.xlu0 %1131
      %v1133 = vsel %vm414, %v1130, %v1132
      %v1134 = vsel %vm414, %v1132, %v1130
      %v1135 = vmul.f32 %v1133, %v420
      %v1136 = vmul.f32 %v1134, %v424
      %v1138 = vsel %vm427, %v1071, 0
      %v1141 = vsel %vm427, %v1072, 0
      %1143 = vmatprep.subr.mxu0 0.0
      %1144 = vmatpush1.msra.mxu0 0.0
      %1145 = vmatprep.subr.mxu0 0.0
      %1146 = vmatpush1.msra.mxu0 0.0
      %1147 = vmatprep.subr.mxu0 0.0
      %1148 = vmatpush1.msra.mxu0 0.0
      %1149 = vmatprep.subr.mxu0 0.0
      %1150 = vmatpush1.msra.mxu0 0.0
      %1151 = vmatprep.subr.mxu0 0.0
      %1152 = vmatpush1.msra.mxu0 0.0
      %1153 = vmatprep.subr.mxu0 0.0
      %1154 = vmatpush1.msra.mxu0 0.0
      %1155 = vmatprep.subr.mxu0 %v433
      %1156 = vmatpush1.msra.mxu0 %v433
      %1157 = vmatprep.subr.mxu0 %v1136
      %1158 = vmatpush1.msra.mxu0 %v1135
      %1159 = vmatprep.subr.mxu0 %v1128
      %1160 = vmatpush1.msra.mxu0 %v1127
      %1161 = vmatprep.subr.mxu0 %v1120
      %1162 = vmatpush1.msra.mxu0 %v1119
      %1163 = vmatprep.subr.mxu0 %v1112
      %1164 = vmatpush1.msra.mxu0 %v1111
      %1165 = vmatprep.subr.mxu0 %v1069
      %1166 = vmatpush1.msra.mxu0 %v1067
      %1167 = vmatprep.subr.mxu0 %v1104
      %1168 = vmatpush1.msra.mxu0 %v1103
      %1169 = vmatprep.subr.mxu0 %v1096
      %1170 = vmatpush1.msra.mxu0 %v1095
      %1171 = vmatprep.subr.mxu0 %v1088
      %1172 = vmatpush1.msra.mxu0 %v1087
      %1173 = vmatprep.subr.mxu0 %v1080
      %1174 = vmatpush1.msra.mxu0 %v1079
      %1175 = vmatprep.subr.mxu0 0.0
      %1176 = vmatpush2.msra.mxu0 0.0
      %1177 = vmatprep.subr.mxu0 0.0
      %1178 = vmatpush2.msra.mxu0 0.0
      %1179 = vmatprep.subr.mxu0 0.0
      %1180 = vmatpush2.msra.mxu0 0.0
      %1181 = vmatprep.subr.mxu0 0.0
      %1182 = vmatpush2.msra.mxu0 0.0
      %1183 = vmatprep.subr.mxu0 0.0
      %1184 = vmatpush2.msra.mxu0 0.0
      %1185 = vmatprep.subr.mxu0 0.0
      %1186 = vmatpush2.msra.mxu0 0.0
      %1187 = vmatprep.subr.mxu0 0.0
      %1188 = vmatpush2.msra.mxu0 0.0
      %1189 = vmatprep.subr.mxu0 0.0
      %1190 = vmatpush2.msra.mxu0 0.0
      %1191 = vmatprep.subr.mxu0 0.0
      %1192 = vmatpush2.msra.mxu0 0.0
      %1193 = vmatprep.subr.mxu0 0.0
      %1194 = vmatpush2.msra.mxu0 0.0
      %1195 = vmatprep.subr.mxu0 0.0
      %1196 = vmatpush2.msra.mxu0 0.0
      %1197 = vmatprep.subr.mxu0 0.0
      %1198 = vmatpush2.msra.mxu0 0.0
      %1199 = vmatprep.subr.mxu0 0.0
      %1200 = vmatpush2.msra.mxu0 0.0
      %1201 = vmatprep.subr.mxu0 0.0
      %1202 = vmatpush2.msra.mxu0 0.0
      %1203 = vmatprep.subr.mxu0 0.0
      %1204 = vmatpush2.msra.mxu0 0.0
      %1205 = vmatprep.subr.mxu0 0.0
      %1206 = vmatpush2.msra.mxu0 0.0
      %1207 = vmatprep.mubr.f32.mxu0 0.0
      %1208 = vmatmul.mubr.f32.gmra.mxu0 %v1138
      %v1209 = vpop.f32.mrf.mxu0
      %v1210 = vadd.f32 0.0, %v1209
      %v1211 = vpop.f32.mrf.mxu0
      %v1212 = vadd.f32 0.0, %v1211
      %1213 = vmatprep.mubr.f32.mxu0 0.0
      %1214 = vmatmul.mubr.f32.gmra.mxu0 %v1141
      %v1215 = vpop.f32.mrf.mxu0
      %v1216 = vadd.f32 0.0, %v1215
      %v1217 = vpop.f32.mrf.mxu0
      %v1218 = vadd.f32 0.0, %v1217
      %1219 = vdwg.mxu0
      %v1220 = vmax.f32 %v1210, 0.0
      %v1221 = vmax.f32 %v1212, 0.0
      %v1222 = vmax.f32 %v1216, 0.0
      %v1223 = vmax.f32 %v1218, 0.0
      %v1224 = vld [vmem:[%s5] sm:$0xff]
      %v1225 = vld [vmem:[%s5 + $0x8] sm:$0xff]
      %v1226 = vld [vmem:[%s5 + $0x10] sm:$0xff]
      %v1227 = vld [vmem:[%s5 + $0x18] sm:$0xff]
      %1228 = vrot.lane.b32.xlu0 %v1220, 17
      %v1229 = vpop.permute.xlu0 %1228
      %1230 = vrot.lane.b32.xlu0 %v1222, 17
      %v1231 = vpop.permute.xlu0 %1230
      %1232 = vrot.lane.b32.xlu0 %v1221, 17
      %v1233 = vpop.permute.xlu0 %1232
      %1234 = vrot.lane.b32.xlu0 %v1223, 17
      %v1235 = vpop.permute.xlu0 %1234
      %v1236 = vsel %vm295, %v1229, %v1233
      %v1237 = vsel %vm295, %v1231, %v1235
      %v1238 = vsel %vm295, %v1233, %v1229
      %v1239 = vsel %vm295, %v1235, %v1231
      %v1240 = vmul.f32 %v1238, %v301
      %v1241 = vmul.f32 %v1236, %v305
      %v1242 = vmul.f32 %v1239, %v301
      %v1243 = vmul.f32 %v1237, %v305
      %1244 = vrot.lane.b32.xlu0 %v1220, 16
      %v1245 = vpop.permute.xlu0 %1244
      %1246 = vrot.lane.b32.xlu0 %v1222, 16
      %v1247 = vpop.permute.xlu0 %1246
      %1248 = vrot.lane.b32.xlu0 %v1221, 16
      %v1249 = vpop.permute.xlu0 %1248
      %1250 = vrot.lane.b32.xlu0 %v1223, 16
      %v1251 = vpop.permute.xlu0 %1250
      %v1252 = vsel %vm312, %v1245, %v1249
      %v1253 = vsel %vm312, %v1247, %v1251
      %v1254 = vsel %vm312, %v1249, %v1245
      %v1255 = vsel %vm312, %v1251, %v1247
      %v1256 = vmul.f32 %v1254, %v318
      %v1257 = vmul.f32 %v1252, %v322
      %v1258 = vmul.f32 %v1255, %v318
      %v1259 = vmul.f32 %v1253, %v322
      %1260 = vrot.lane.b32.xlu0 %v1220, 15
      %v1261 = vpop.permute.xlu0 %1260
      %1262 = vrot.lane.b32.xlu0 %v1222, 15
      %v1263 = vpop.permute.xlu0 %1262
      %1264 = vrot.lane.b32.xlu0 %v1221, 15
      %v1265 = vpop.permute.xlu0 %1264
      %1266 = vrot.lane.b32.xlu0 %v1223, 15
      %v1267 = vpop.permute.xlu0 %1266
      %v1268 = vsel %vm329, %v1261, %v1265
      %v1269 = vsel %vm329, %v1263, %v1267
      %v1270 = vsel %vm329, %v1265, %v1261
      %v1271 = vsel %vm329, %v1267, %v1263
      %v1272 = vmul.f32 %v1270, %v335
      %v1273 = vmul.f32 %v1268, %v339
      %v1274 = vmul.f32 %v1271, %v335
      %v1275 = vmul.f32 %v1269, %v339
      %1276 = vrot.lane.b32.xlu0 %v1220, 1
      %v1277 = vpop.permute.xlu0 %1276
      %1278 = vrot.lane.b32.xlu0 %v1222, 1
      %v1279 = vpop.permute.xlu0 %1278
      %1280 = vrot.lane.b32.xlu0 %v1221, 1
      %v1281 = vpop.permute.xlu0 %1280
      %1282 = vrot.lane.b32.xlu0 %v1223, 1
      %v1283 = vpop.permute.xlu0 %1282
      %v1284 = vsel %vm346, %v1277, %v1281
      %v1285 = vsel %vm346, %v1279, %v1283
      %v1286 = vsel %vm346, %v1281, %v1277
      %v1287 = vsel %vm346, %v1283, %v1279
      %v1288 = vmul.f32 %v1286, %v352
      %v1289 = vmul.f32 %v1284, %v356
      %v1290 = vmul.f32 %v1287, %v352
      %v1291 = vmul.f32 %v1285, %v356
      %1292 = vrot.lane.b32.xlu0 %v1220, 127
      %v1293 = vpop.permute.xlu0 %1292
      %1294 = vrot.lane.b32.xlu0 %v1222, 127
      %v1295 = vpop.permute.xlu0 %1294
      %1296 = vrot.lane.b32.xlu0 %v1221, 127
      %v1297 = vpop.permute.xlu0 %1296
      %1298 = vrot.lane.b32.xlu0 %v1223, 127
      %v1299 = vpop.permute.xlu0 %1298
      %v1300 = vsel %vm363, %v1293, %v1297
      %v1301 = vsel %vm363, %v1295, %v1299
      %v1302 = vsel %vm363, %v1297, %v1293
      %v1303 = vsel %vm363, %v1299, %v1295
      %v1304 = vmul.f32 %v1300, %v369
      %v1305 = vmul.f32 %v1302, %v373
      %v1306 = vmul.f32 %v1301, %v369
      %v1307 = vmul.f32 %v1303, %v373
      %1308 = vrot.lane.b32.xlu0 %v1220, 113
      %v1309 = vpop.permute.xlu0 %1308
      %1310 = vrot.lane.b32.xlu0 %v1222, 113
      %v1311 = vpop.permute.xlu0 %1310
      %1312 = vrot.lane.b32.xlu0 %v1221, 113
      %v1313 = vpop.permute.xlu0 %1312
      %1314 = vrot.lane.b32.xlu0 %v1223, 113
      %v1315 = vpop.permute.xlu0 %1314
      %v1316 = vsel %vm380, %v1309, %v1313
      %v1317 = vsel %vm380, %v1311, %v1315
      %v1318 = vsel %vm380, %v1313, %v1309
      %v1319 = vsel %vm380, %v1315, %v1311
      %v1320 = vmul.f32 %v1316, %v386
      %v1321 = vmul.f32 %v1318, %v390
      %v1322 = vmul.f32 %v1317, %v386
      %v1323 = vmul.f32 %v1319, %v390
      %1324 = vrot.lane.b32.xlu0 %v1220, 112
      %v1325 = vpop.permute.xlu0 %1324
      %1326 = vrot.lane.b32.xlu0 %v1222, 112
      %v1327 = vpop.permute.xlu0 %1326
      %1328 = vrot.lane.b32.xlu0 %v1221, 112
      %v1329 = vpop.permute.xlu0 %1328
      %1330 = vrot.lane.b32.xlu0 %v1223, 112
      %v1331 = vpop.permute.xlu0 %1330
      %v1332 = vsel %vm397, %v1325, %v1329
      %v1333 = vsel %vm397, %v1327, %v1331
      %v1334 = vsel %vm397, %v1329, %v1325
      %v1335 = vsel %vm397, %v1331, %v1327
      %v1336 = vmul.f32 %v1332, %v403
      %v1337 = vmul.f32 %v1334, %v407
      %v1338 = vmul.f32 %v1333, %v403
      %v1339 = vmul.f32 %v1335, %v407
      %1340 = vrot.lane.b32.xlu0 %v1220, 111
      %v1341 = vpop.permute.xlu0 %1340
      %1342 = vrot.lane.b32.xlu0 %v1222, 111
      %v1343 = vpop.permute.xlu0 %1342
      %1344 = vrot.lane.b32.xlu0 %v1221, 111
      %v1345 = vpop.permute.xlu0 %1344
      %1346 = vrot.lane.b32.xlu0 %v1223, 111
      %v1347 = vpop.permute.xlu0 %1346
      %v1348 = vsel %vm414, %v1341, %v1345
      %v1349 = vsel %vm414, %v1343, %v1347
      %v1350 = vsel %vm414, %v1345, %v1341
      %v1351 = vsel %vm414, %v1347, %v1343
      %v1352 = vmul.f32 %v1348, %v420
      %v1353 = vmul.f32 %v1350, %v424
      %v1354 = vmul.f32 %v1349, %v420
      %v1355 = vmul.f32 %v1351, %v424
      %vm1356 = vcmask 138240
      %v1358 = vsel %vm1356, %v1225, 0
      %v1361 = vsel %vm1356, %v1227, 0
      %1363 = vmatprep.subr.mxu0 %v1339
      %1364 = vmatpush1.msra.mxu0 %v1338
      %1365 = vmatprep.subr.mxu0 %v1337
      %1366 = vmatpush1.msra.mxu0 %v1336
      %1367 = vmatprep.subr.mxu0 %v1323
      %1368 = vmatpush1.msra.mxu0 %v1322
      %1369 = vmatprep.subr.mxu0 %v1321
      %1370 = vmatpush1.msra.mxu0 %v1320
      %1371 = vmatprep.subr.mxu0 %v1307
      %1372 = vmatpush1.msra.mxu0 %v1306
      %1373 = vmatprep.subr.mxu0 %v1305
      %1374 = vmatpush1.msra.mxu0 %v1304
      %1375 = vmatprep.subr.mxu0 %v1223
      %1376 = vmatpush1.msra.mxu0 %v1222
      %1377 = vmatprep.subr.mxu0 %v1221
      %1378 = vmatpush1.msra.mxu0 %v1220
      %1379 = vmatprep.subr.mxu0 %v1291
      %1380 = vmatpush1.msra.mxu0 %v1290
      %1381 = vmatprep.subr.mxu0 %v1289
      %1382 = vmatpush1.msra.mxu0 %v1288
      %1383 = vmatprep.subr.mxu0 %v1275
      %1384 = vmatpush1.msra.mxu0 %v1274
      %1385 = vmatprep.subr.mxu0 %v1273
      %1386 = vmatpush1.msra.mxu0 %v1272
      %1387 = vmatprep.subr.mxu0 %v1259
      %1388 = vmatpush1.msra.mxu0 %v1258
      %1389 = vmatprep.subr.mxu0 %v1257
      %1390 = vmatpush1.msra.mxu0 %v1256
      %1391 = vmatprep.subr.mxu0 %v1243
      %1392 = vmatpush1.msra.mxu0 %v1242
      %1393 = vmatprep.subr.mxu0 %v1241
      %1394 = vmatpush1.msra.mxu0 %v1240
      %1395 = vmatprep.subr.mxu0 0.0
      %1396 = vmatpush2.msra.mxu0 0.0
      %1397 = vmatprep.subr.mxu0 0.0
      %1398 = vmatpush2.msra.mxu0 0.0
      %1399 = vmatprep.subr.mxu0 0.0
      %1400 = vmatpush2.msra.mxu0 0.0
      %1401 = vmatprep.subr.mxu0 0.0
      %1402 = vmatpush2.msra.mxu0 0.0
      %1403 = vmatprep.subr.mxu0 0.0
      %1404 = vmatpush2.msra.mxu0 0.0
      %1405 = vmatprep.subr.mxu0 0.0
      %1406 = vmatpush2.msra.mxu0 0.0
      %1407 = vmatprep.subr.mxu0 0.0
      %1408 = vmatpush2.msra.mxu0 0.0
      %1409 = vmatprep.subr.mxu0 0.0
      %1410 = vmatpush2.msra.mxu0 0.0
      %1411 = vmatprep.subr.mxu0 0.0
      %1412 = vmatpush2.msra.mxu0 0.0
      %1413 = vmatprep.subr.mxu0 0.0
      %1414 = vmatpush2.msra.mxu0 0.0
      %1415 = vmatprep.subr.mxu0 0.0
      %1416 = vmatpush2.msra.mxu0 0.0
      %1417 = vmatprep.subr.mxu0 0.0
      %1418 = vmatpush2.msra.mxu0 0.0
      %1419 = vmatprep.subr.mxu0 0.0
      %1420 = vmatpush2.msra.mxu0 0.0
      %1421 = vmatprep.subr.mxu0 %v433
      %1422 = vmatpush2.msra.mxu0 %v433
      %1423 = vmatprep.subr.mxu0 %v1355
      %1424 = vmatpush2.msra.mxu0 %v1354
      %1425 = vmatprep.subr.mxu0 %v1353
      %1426 = vmatpush2.msra.mxu0 %v1352
      %1427 = vmatprep.mubr.f32.mxu0 %v1358
      %1428 = vmatmul.mubr.f32.gmra.mxu0 %v1224
      %v1429 = vpop.f32.mrf.mxu0
      %v1430 = vadd.f32 0.0, %v1429
      %v1431 = vpop.f32.mrf.mxu0
      %v1432 = vadd.f32 0.0, %v1431
      %1433 = vmatprep.mubr.f32.mxu0 %v1361
      %1434 = vmatmul.mubr.f32.gmra.mxu0 %v1226
      %v1435 = vpop.f32.mrf.mxu0
      %v1436 = vadd.f32 0.0, %v1435
      %v1437 = vpop.f32.mrf.mxu0
      %v1438 = vadd.f32 0.0, %v1437
      %1439 = vdwg.mxu0
      %v1440 = vmax.f32 %v1430, 0.0
      %v1441 = vmax.f32 %v1432, 0.0
      %v1442 = vmax.f32 %v1436, 0.0
      %v1443 = vmax.f32 %v1438, 0.0
      %s1444 = scalar_lea.vmem %s5, 32
      %v1445 = vld [vmem:[%s1444] sm:$0xff]
      %v1446 = vld [vmem:[%s1444 + $0x8] sm:$0xff]
      %v1447 = vld [vmem:[%s1444 + $0x10] sm:$0xff]
      %v1448 = vld [vmem:[%s1444 + $0x18] sm:$0xff]
      %1449 = vrot.lane.b32.xlu0 %v1440, 17
      %v1450 = vpop.permute.xlu0 %1449
      %1451 = vrot.lane.b32.xlu0 %v1442, 17
      %v1452 = vpop.permute.xlu0 %1451
      %1453 = vrot.lane.b32.xlu0 %v1441, 17
      %v1454 = vpop.permute.xlu0 %1453
      %1455 = vrot.lane.b32.xlu0 %v1443, 17
      %v1456 = vpop.permute.xlu0 %1455
      %v1457 = vsel %vm295, %v1450, %v1454
      %v1458 = vsel %vm295, %v1452, %v1456
      %v1459 = vsel %vm295, %v1454, %v1450
      %v1460 = vsel %vm295, %v1456, %v1452
      %v1461 = vmul.f32 %v1459, %v301
      %v1462 = vmul.f32 %v1457, %v305
      %v1463 = vmul.f32 %v1460, %v301
      %v1464 = vmul.f32 %v1458, %v305
      %1465 = vrot.lane.b32.xlu0 %v1440, 16
      %v1466 = vpop.permute.xlu0 %1465
      %1467 = vrot.lane.b32.xlu0 %v1442, 16
      %v1468 = vpop.permute.xlu0 %1467
      %1469 = vrot.lane.b32.xlu0 %v1441, 16
      %v1470 = vpop.permute.xlu0 %1469
      %1471 = vrot.lane.b32.xlu0 %v1443, 16
      %v1472 = vpop.permute.xlu0 %1471
      %v1473 = vsel %vm312, %v1466, %v1470
      %v1474 = vsel %vm312, %v1468, %v1472
      %v1475 = vsel %vm312, %v1470, %v1466
      %v1476 = vsel %vm312, %v1472, %v1468
      %v1477 = vmul.f32 %v1475, %v318
      %v1478 = vmul.f32 %v1473, %v322
      %v1479 = vmul.f32 %v1476, %v318
      %v1480 = vmul.f32 %v1474, %v322
      %1481 = vrot.lane.b32.xlu0 %v1440, 15
      %v1482 = vpop.permute.xlu0 %1481
      %1483 = vrot.lane.b32.xlu0 %v1442, 15
      %v1484 = vpop.permute.xlu0 %1483
      %1485 = vrot.lane.b32.xlu0 %v1441, 15
      %v1486 = vpop.permute.xlu0 %1485
      %1487 = vrot.lane.b32.xlu0 %v1443, 15
      %v1488 = vpop.permute.xlu0 %1487
      %v1489 = vsel %vm329, %v1482, %v1486
      %v1490 = vsel %vm329, %v1484, %v1488
      %v1491 = vsel %vm329, %v1486, %v1482
      %v1492 = vsel %vm329, %v1488, %v1484
      %v1493 = vmul.f32 %v1491, %v335
      %v1494 = vmul.f32 %v1489, %v339
      %v1495 = vmul.f32 %v1492, %v335
      %v1496 = vmul.f32 %v1490, %v339
      %1497 = vrot.lane.b32.xlu0 %v1440, 1
      %v1498 = vpop.permute.xlu0 %1497
      %1499 = vrot.lane.b32.xlu0 %v1442, 1
      %v1500 = vpop.permute.xlu0 %1499
      %1501 = vrot.lane.b32.xlu0 %v1441, 1
      %v1502 = vpop.permute.xlu0 %1501
      %1503 = vrot.lane.b32.xlu0 %v1443, 1
      %v1504 = vpop.permute.xlu0 %1503
      %v1505 = vsel %vm346, %v1498, %v1502
      %v1506 = vsel %vm346, %v1500, %v1504
      %v1507 = vsel %vm346, %v1502, %v1498
      %v1508 = vsel %vm346, %v1504, %v1500
      %v1509 = vmul.f32 %v1507, %v352
      %v1510 = vmul.f32 %v1505, %v356
      %v1511 = vmul.f32 %v1508, %v352
      %v1512 = vmul.f32 %v1506, %v356
      %1513 = vrot.lane.b32.xlu0 %v1440, 127
      %v1514 = vpop.permute.xlu0 %1513
      %1515 = vrot.lane.b32.xlu0 %v1442, 127
      %v1516 = vpop.permute.xlu0 %1515
      %1517 = vrot.lane.b32.xlu0 %v1441, 127
      %v1518 = vpop.permute.xlu0 %1517
      %1519 = vrot.lane.b32.xlu0 %v1443, 127
      %v1520 = vpop.permute.xlu0 %1519
      %v1521 = vsel %vm363, %v1514, %v1518
      %v1522 = vsel %vm363, %v1516, %v1520
      %v1523 = vsel %vm363, %v1518, %v1514
      %v1524 = vsel %vm363, %v1520, %v1516
      %v1525 = vmul.f32 %v1521, %v369
      %v1526 = vmul.f32 %v1523, %v373
      %v1527 = vmul.f32 %v1522, %v369
      %v1528 = vmul.f32 %v1524, %v373
      %1529 = vrot.lane.b32.xlu0 %v1440, 113
      %v1530 = vpop.permute.xlu0 %1529
      %1531 = vrot.lane.b32.xlu0 %v1442, 113
      %v1532 = vpop.permute.xlu0 %1531
      %1533 = vrot.lane.b32.xlu0 %v1441, 113
      %v1534 = vpop.permute.xlu0 %1533
      %1535 = vrot.lane.b32.xlu0 %v1443, 113
      %v1536 = vpop.permute.xlu0 %1535
      %v1537 = vsel %vm380, %v1530, %v1534
      %v1538 = vsel %vm380, %v1532, %v1536
      %v1539 = vsel %vm380, %v1534, %v1530
      %v1540 = vsel %vm380, %v1536, %v1532
      %v1541 = vmul.f32 %v1537, %v386
      %v1542 = vmul.f32 %v1539, %v390
      %v1543 = vmul.f32 %v1538, %v386
      %v1544 = vmul.f32 %v1540, %v390
      %1545 = vrot.lane.b32.xlu0 %v1440, 112
      %v1546 = vpop.permute.xlu0 %1545
      %1547 = vrot.lane.b32.xlu0 %v1442, 112
      %v1548 = vpop.permute.xlu0 %1547
      %1549 = vrot.lane.b32.xlu0 %v1441, 112
      %v1550 = vpop.permute.xlu0 %1549
      %1551 = vrot.lane.b32.xlu0 %v1443, 112
      %v1552 = vpop.permute.xlu0 %1551
      %v1553 = vsel %vm397, %v1546, %v1550
      %v1554 = vsel %vm397, %v1548, %v1552
      %v1555 = vsel %vm397, %v1550, %v1546
      %v1556 = vsel %vm397, %v1552, %v1548
      %v1557 = vmul.f32 %v1553, %v403
      %v1558 = vmul.f32 %v1555, %v407
      %v1559 = vmul.f32 %v1554, %v403
      %v1560 = vmul.f32 %v1556, %v407
      %1561 = vrot.lane.b32.xlu0 %v1440, 111
      %v1562 = vpop.permute.xlu0 %1561
      %1563 = vrot.lane.b32.xlu0 %v1442, 111
      %v1564 = vpop.permute.xlu0 %1563
      %1565 = vrot.lane.b32.xlu0 %v1441, 111
      %v1566 = vpop.permute.xlu0 %1565
      %1567 = vrot.lane.b32.xlu0 %v1443, 111
      %v1568 = vpop.permute.xlu0 %1567
      %v1569 = vsel %vm414, %v1562, %v1566
      %v1570 = vsel %vm414, %v1564, %v1568
      %v1571 = vsel %vm414, %v1566, %v1562
      %v1572 = vsel %vm414, %v1568, %v1564
      %v1573 = vmul.f32 %v1569, %v420
      %v1574 = vmul.f32 %v1571, %v424
      %v1575 = vmul.f32 %v1570, %v420
      %v1576 = vmul.f32 %v1572, %v424
      %v1578 = vsel %vm1356, %v1446, 0
      %v1581 = vsel %vm1356, %v1448, 0
      %1583 = vmatprep.subr.mxu0 %v1560
      %1584 = vmatpush1.msra.mxu0 %v1559
      %1585 = vmatprep.subr.mxu0 %v1558
      %1586 = vmatpush1.msra.mxu0 %v1557
      %1587 = vmatprep.subr.mxu0 %v1544
      %1588 = vmatpush1.msra.mxu0 %v1543
      %1589 = vmatprep.subr.mxu0 %v1542
      %1590 = vmatpush1.msra.mxu0 %v1541
      %1591 = vmatprep.subr.mxu0 %v1528
      %1592 = vmatpush1.msra.mxu0 %v1527
      %1593 = vmatprep.subr.mxu0 %v1526
      %1594 = vmatpush1.msra.mxu0 %v1525
      %1595 = vmatprep.subr.mxu0 %v1443
      %1596 = vmatpush1.msra.mxu0 %v1442
      %1597 = vmatprep.subr.mxu0 %v1441
      %1598 = vmatpush1.msra.mxu0 %v1440
      %1599 = vmatprep.subr.mxu0 %v1512
      %1600 = vmatpush1.msra.mxu0 %v1511
      %1601 = vmatprep.subr.mxu0 %v1510
      %1602 = vmatpush1.msra.mxu0 %v1509
      %1603 = vmatprep.subr.mxu0 %v1496
      %1604 = vmatpush1.msra.mxu0 %v1495
      %1605 = vmatprep.subr.mxu0 %v1494
      %1606 = vmatpush1.msra.mxu0 %v1493
      %1607 = vmatprep.subr.mxu0 %v1480
      %1608 = vmatpush1.msra.mxu0 %v1479
      %1609 = vmatprep.subr.mxu0 %v1478
      %1610 = vmatpush1.msra.mxu0 %v1477
      %1611 = vmatprep.subr.mxu0 %v1464
      %1612 = vmatpush1.msra.mxu0 %v1463
      %1613 = vmatprep.subr.mxu0 %v1462
      %1614 = vmatpush1.msra.mxu0 %v1461
      %1615 = vmatprep.subr.mxu0 0.0
      %1616 = vmatpush2.msra.mxu0 0.0
      %1617 = vmatprep.subr.mxu0 0.0
      %1618 = vmatpush2.msra.mxu0 0.0
      %1619 = vmatprep.subr.mxu0 0.0
      %1620 = vmatpush2.msra.mxu0 0.0
      %1621 = vmatprep.subr.mxu0 0.0
      %1622 = vmatpush2.msra.mxu0 0.0
      %1623 = vmatprep.subr.mxu0 0.0
      %1624 = vmatpush2.msra.mxu0 0.0
      %1625 = vmatprep.subr.mxu0 0.0
      %1626 = vmatpush2.msra.mxu0 0.0
      %1627 = vmatprep.subr.mxu0 0.0
      %1628 = vmatpush2.msra.mxu0 0.0
      %1629 = vmatprep.subr.mxu0 0.0
      %1630 = vmatpush2.msra.mxu0 0.0
      %1631 = vmatprep.subr.mxu0 0.0
      %1632 = vmatpush2.msra.mxu0 0.0
      %1633 = vmatprep.subr.mxu0 0.0
      %1634 = vmatpush2.msra.mxu0 0.0
      %1635 = vmatprep.subr.mxu0 0.0
      %1636 = vmatpush2.msra.mxu0 0.0
      %1637 = vmatprep.subr.mxu0 0.0
      %1638 = vmatpush2.msra.mxu0 0.0
      %1639 = vmatprep.subr.mxu0 0.0
      %1640 = vmatpush2.msra.mxu0 0.0
      %1641 = vmatprep.subr.mxu0 %v433
      %1642 = vmatpush2.msra.mxu0 %v433
      %1643 = vmatprep.subr.mxu0 %v1576
      %1644 = vmatpush2.msra.mxu0 %v1575
      %1645 = vmatprep.subr.mxu0 %v1574
      %1646 = vmatpush2.msra.mxu0 %v1573
      %1647 = vmatprep.mubr.f32.mxu0 %v1578
      %1648 = vmatmul.mubr.f32.gmra.mxu0 %v1445
      %v1649 = vpop.f32.mrf.mxu0
      %v1650 = vadd.f32 %v1220, %v1649
      %v1651 = vpop.f32.mrf.mxu0
      %v1652 = vadd.f32 %v1221, %v1651
      %1653 = vmatprep.mubr.f32.mxu0 %v1581
      %1654 = vmatmul.mubr.f32.gmra.mxu0 %v1447
      %v1655 = vpop.f32.mrf.mxu0
      %v1656 = vadd.f32 %v1222, %v1655
      %v1657 = vpop.f32.mrf.mxu0
      %v1658 = vadd.f32 %v1223, %v1657
      %1659 = vdwg.mxu0
      %s1660 = scalar_lea.vmem %s5, 64
      %v1661 = vld [vmem:[%s1660] sm:$0xff]
      %v1662 = vld [vmem:[%s1660 + $0x8] sm:$0xff]
      %v1663 = vld [vmem:[%s1660 + $0x10] sm:$0xff]
      %v1664 = vld [vmem:[%s1660 + $0x18] sm:$0xff]
      %1665 = vrot.lane.b32.xlu0 %v1650, 17
      %v1666 = vpop.permute.xlu0 %1665
      %1667 = vrot.lane.b32.xlu0 %v1656, 17
      %v1668 = vpop.permute.xlu0 %1667
      %1669 = vrot.lane.b32.xlu0 %v1652, 17
      %v1670 = vpop.permute.xlu0 %1669
      %1671 = vrot.lane.b32.xlu0 %v1658, 17
      %v1672 = vpop.permute.xlu0 %1671
      %v1673 = vsel %vm295, %v1666, %v1670
      %v1674 = vsel %vm295, %v1668, %v1672
      %v1675 = vsel %vm295, %v1670, %v1666
      %v1676 = vsel %vm295, %v1672, %v1668
      %v1677 = vmul.f32 %v1675, %v301
      %v1678 = vmul.f32 %v1673, %v305
      %v1679 = vmul.f32 %v1676, %v301
      %v1680 = vmul.f32 %v1674, %v305
      %1681 = vrot.lane.b32.xlu0 %v1650, 16
      %v1682 = vpop.permute.xlu0 %1681
      %1683 = vrot.lane.b32.xlu0 %v1656, 16
      %v1684 = vpop.permute.xlu0 %1683
      %1685 = vrot.lane.b32.xlu0 %v1652, 16
      %v1686 = vpop.permute.xlu0 %1685
      %1687 = vrot.lane.b32.xlu0 %v1658, 16
      %v1688 = vpop.permute.xlu0 %1687
      %v1689 = vsel %vm312, %v1682, %v1686
      %v1690 = vsel %vm312, %v1684, %v1688
      %v1691 = vsel %vm312, %v1686, %v1682
      %v1692 = vsel %vm312, %v1688, %v1684
      %v1693 = vmul.f32 %v1691, %v318
      %v1694 = vmul.f32 %v1689, %v322
      %v1695 = vmul.f32 %v1692, %v318
      %v1696 = vmul.f32 %v1690, %v322
      %1697 = vrot.lane.b32.xlu0 %v1650, 15
      %v1698 = vpop.permute.xlu0 %1697
      %1699 = vrot.lane.b32.xlu0 %v1656, 15
      %v1700 = vpop.permute.xlu0 %1699
      %1701 = vrot.lane.b32.xlu0 %v1652, 15
      %v1702 = vpop.permute.xlu0 %1701
      %1703 = vrot.lane.b32.xlu0 %v1658, 15
      %v1704 = vpop.permute.xlu0 %1703
      %v1705 = vsel %vm329, %v1698, %v1702
      %v1706 = vsel %vm329, %v1700, %v1704
      %v1707 = vsel %vm329, %v1702, %v1698
      %v1708 = vsel %vm329, %v1704, %v1700
      %v1709 = vmul.f32 %v1707, %v335
      %v1710 = vmul.f32 %v1705, %v339
      %v1711 = vmul.f32 %v1708, %v335
      %v1712 = vmul.f32 %v1706, %v339
      %1713 = vrot.lane.b32.xlu0 %v1650, 1
      %v1714 = vpop.permute.xlu0 %1713
      %1715 = vrot.lane.b32.xlu0 %v1656, 1
      %v1716 = vpop.permute.xlu0 %1715
      %1717 = vrot.lane.b32.xlu0 %v1652, 1
      %v1718 = vpop.permute.xlu0 %1717
      %1719 = vrot.lane.b32.xlu0 %v1658, 1
      %v1720 = vpop.permute.xlu0 %1719
      %v1721 = vsel %vm346, %v1714, %v1718
      %v1722 = vsel %vm346, %v1716, %v1720
      %v1723 = vsel %vm346, %v1718, %v1714
      %v1724 = vsel %vm346, %v1720, %v1716
      %v1725 = vmul.f32 %v1723, %v352
      %v1726 = vmul.f32 %v1721, %v356
      %v1727 = vmul.f32 %v1724, %v352
      %v1728 = vmul.f32 %v1722, %v356
      %1729 = vrot.lane.b32.xlu0 %v1650, 127
      %v1730 = vpop.permute.xlu0 %1729
      %1731 = vrot.lane.b32.xlu0 %v1656, 127
      %v1732 = vpop.permute.xlu0 %1731
      %1733 = vrot.lane.b32.xlu0 %v1652, 127
      %v1734 = vpop.permute.xlu0 %1733
      %1735 = vrot.lane.b32.xlu0 %v1658, 127
      %v1736 = vpop.permute.xlu0 %1735
      %v1737 = vsel %vm363, %v1730, %v1734
      %v1738 = vsel %vm363, %v1732, %v1736
      %v1739 = vsel %vm363, %v1734, %v1730
      %v1740 = vsel %vm363, %v1736, %v1732
      %v1741 = vmul.f32 %v1737, %v369
      %v1742 = vmul.f32 %v1739, %v373
      %v1743 = vmul.f32 %v1738, %v369
      %v1744 = vmul.f32 %v1740, %v373
      %1745 = vrot.lane.b32.xlu0 %v1650, 113
      %v1746 = vpop.permute.xlu0 %1745
      %1747 = vrot.lane.b32.xlu0 %v1656, 113
      %v1748 = vpop.permute.xlu0 %1747
      %1749 = vrot.lane.b32.xlu0 %v1652, 113
      %v1750 = vpop.permute.xlu0 %1749
      %1751 = vrot.lane.b32.xlu0 %v1658, 113
      %v1752 = vpop.permute.xlu0 %1751
      %v1753 = vsel %vm380, %v1746, %v1750
      %v1754 = vsel %vm380, %v1748, %v1752
      %v1755 = vsel %vm380, %v1750, %v1746
      %v1756 = vsel %vm380, %v1752, %v1748
      %v1757 = vmul.f32 %v1753, %v386
      %v1758 = vmul.f32 %v1755, %v390
      %v1759 = vmul.f32 %v1754, %v386
      %v1760 = vmul.f32 %v1756, %v390
      %1761 = vrot.lane.b32.xlu0 %v1650, 112
      %v1762 = vpop.permute.xlu0 %1761
      %1763 = vrot.lane.b32.xlu0 %v1656, 112
      %v1764 = vpop.permute.xlu0 %1763
      %1765 = vrot.lane.b32.xlu0 %v1652, 112
      %v1766 = vpop.permute.xlu0 %1765
      %1767 = vrot.lane.b32.xlu0 %v1658, 112
      %v1768 = vpop.permute.xlu0 %1767
      %v1769 = vsel %vm397, %v1762, %v1766
      %v1770 = vsel %vm397, %v1764, %v1768
      %v1771 = vsel %vm397, %v1766, %v1762
      %v1772 = vsel %vm397, %v1768, %v1764
      %v1773 = vmul.f32 %v1769, %v403
      %v1774 = vmul.f32 %v1771, %v407
      %v1775 = vmul.f32 %v1770, %v403
      %v1776 = vmul.f32 %v1772, %v407
      %1777 = vrot.lane.b32.xlu0 %v1650, 111
      %v1778 = vpop.permute.xlu0 %1777
      %1779 = vrot.lane.b32.xlu0 %v1656, 111
      %v1780 = vpop.permute.xlu0 %1779
      %1781 = vrot.lane.b32.xlu0 %v1652, 111
      %v1782 = vpop.permute.xlu0 %1781
      %1783 = vrot.lane.b32.xlu0 %v1658, 111
      %v1784 = vpop.permute.xlu0 %1783
      %v1785 = vsel %vm414, %v1778, %v1782
      %v1786 = vsel %vm414, %v1780, %v1784
      %v1787 = vsel %vm414, %v1782, %v1778
      %v1788 = vsel %vm414, %v1784, %v1780
      %v1789 = vmul.f32 %v1785, %v420
      %v1790 = vmul.f32 %v1787, %v424
      %v1791 = vmul.f32 %v1786, %v420
      %v1792 = vmul.f32 %v1788, %v424
      %v1794 = vsel %vm1356, %v1662, 0
      %v1797 = vsel %vm1356, %v1664, 0
      %1799 = vmatprep.subr.mxu0 %v1776
      %1800 = vmatpush1.msra.mxu0 %v1775
      %1801 = vmatprep.subr.mxu0 %v1774
      %1802 = vmatpush1.msra.mxu0 %v1773
      %1803 = vmatprep.subr.mxu0 %v1760
      %1804 = vmatpush1.msra.mxu0 %v1759
      %1805 = vmatprep.subr.mxu0 %v1758
      %1806 = vmatpush1.msra.mxu0 %v1757
      %1807 = vmatprep.subr.mxu0 %v1744
      %1808 = vmatpush1.msra.mxu0 %v1743
      %1809 = vmatprep.subr.mxu0 %v1742
      %1810 = vmatpush1.msra.mxu0 %v1741
      %1811 = vmatprep.subr.mxu0 %v1658
      %1812 = vmatpush1.msra.mxu0 %v1656
      %1813 = vmatprep.subr.mxu0 %v1652
      %1814 = vmatpush1.msra.mxu0 %v1650
      %1815 = vmatprep.subr.mxu0 %v1728
      %1816 = vmatpush1.msra.mxu0 %v1727
      %1817 = vmatprep.subr.mxu0 %v1726
      %1818 = vmatpush1.msra.mxu0 %v1725
      %1819 = vmatprep.subr.mxu0 %v1712
      %1820 = vmatpush1.msra.mxu0 %v1711
      %1821 = vmatprep.subr.mxu0 %v1710
      %1822 = vmatpush1.msra.mxu0 %v1709
      %1823 = vmatprep.subr.mxu0 %v1696
      %1824 = vmatpush1.msra.mxu0 %v1695
      %1825 = vmatprep.subr.mxu0 %v1694
      %1826 = vmatpush1.msra.mxu0 %v1693
      %1827 = vmatprep.subr.mxu0 %v1680
      %1828 = vmatpush1.msra.mxu0 %v1679
      %1829 = vmatprep.subr.mxu0 %v1678
      %1830 = vmatpush1.msra.mxu0 %v1677
      %1831 = vmatprep.subr.mxu0 0.0
      %1832 = vmatpush2.msra.mxu0 0.0
      %1833 = vmatprep.subr.mxu0 0.0
      %1834 = vmatpush2.msra.mxu0 0.0
      %1835 = vmatprep.subr.mxu0 0.0
      %1836 = vmatpush2.msra.mxu0 0.0
      %1837 = vmatprep.subr.mxu0 0.0
      %1838 = vmatpush2.msra.mxu0 0.0
      %1839 = vmatprep.subr.mxu0 0.0
      %1840 = vmatpush2.msra.mxu0 0.0
      %1841 = vmatprep.subr.mxu0 0.0
      %1842 = vmatpush2.msra.mxu0 0.0
      %1843 = vmatprep.subr.mxu0 0.0
      %1844 = vmatpush2.msra.mxu0 0.0
      %1845 = vmatprep.subr.mxu0 0.0
      %1846 = vmatpush2.msra.mxu0 0.0
      %1847 = vmatprep.subr.mxu0 0.0
      %1848 = vmatpush2.msra.mxu0 0.0
      %1849 = vmatprep.subr.mxu0 0.0
      %1850 = vmatpush2.msra.mxu0 0.0
      %1851 = vmatprep.subr.mxu0 0.0
      %1852 = vmatpush2.msra.mxu0 0.0
      %1853 = vmatprep.subr.mxu0 0.0
      %1854 = vmatpush2.msra.mxu0 0.0
      %1855 = vmatprep.subr.mxu0 0.0
      %1856 = vmatpush2.msra.mxu0 0.0
      %1857 = vmatprep.subr.mxu0 %v433
      %1858 = vmatpush2.msra.mxu0 %v433
      %1859 = vmatprep.subr.mxu0 %v1792
      %1860 = vmatpush2.msra.mxu0 %v1791
      %1861 = vmatprep.subr.mxu0 %v1790
      %1862 = vmatpush2.msra.mxu0 %v1789
      %1863 = vmatprep.mubr.f32.mxu0 %v1794
      %1864 = vmatmul.mubr.f32.gmra.mxu0 %v1661
      %v1865 = vpop.f32.mrf.mxu0
      %v1866 = vadd.f32 0.0, %v1865
      %v1867 = vpop.f32.mrf.mxu0
      %v1868 = vadd.f32 0.0, %v1867
      %1869 = vmatprep.mubr.f32.mxu0 %v1797
      %1870 = vmatmul.mubr.f32.gmra.mxu0 %v1663
      %v1871 = vpop.f32.mrf.mxu0
      %v1872 = vadd.f32 0.0, %v1871
      %v1873 = vpop.f32.mrf.mxu0
      %v1874 = vadd.f32 0.0, %v1873
      %1875 = vdwg.mxu0
      %v1876 = vmax.f32 %v1866, 0.0
      %v1877 = vmax.f32 %v1868, 0.0
      %v1878 = vmax.f32 %v1872, 0.0
      %v1879 = vmax.f32 %v1874, 0.0
      %s1880 = scalar_lea.vmem %s5, 96
      %v1881 = vld [vmem:[%s1880] sm:$0xff]
      %v1882 = vld [vmem:[%s1880 + $0x8] sm:$0xff]
      %v1883 = vld [vmem:[%s1880 + $0x10] sm:$0xff]
      %v1884 = vld [vmem:[%s1880 + $0x18] sm:$0xff]
      %1885 = vrot.lane.b32.xlu0 %v1876, 17
      %v1886 = vpop.permute.xlu0 %1885
      %1887 = vrot.lane.b32.xlu0 %v1878, 17
      %v1888 = vpop.permute.xlu0 %1887
      %1889 = vrot.lane.b32.xlu0 %v1877, 17
      %v1890 = vpop.permute.xlu0 %1889
      %1891 = vrot.lane.b32.xlu0 %v1879, 17
      %v1892 = vpop.permute.xlu0 %1891
      %v1893 = vsel %vm295, %v1886, %v1890
      %v1894 = vsel %vm295, %v1888, %v1892
      %v1895 = vsel %vm295, %v1890, %v1886
      %v1896 = vsel %vm295, %v1892, %v1888
      %v1897 = vmul.f32 %v1895, %v301
      %v1898 = vmul.f32 %v1893, %v305
      %v1899 = vmul.f32 %v1896, %v301
      %v1900 = vmul.f32 %v1894, %v305
      %1901 = vrot.lane.b32.xlu0 %v1876, 16
      %v1902 = vpop.permute.xlu0 %1901
      %1903 = vrot.lane.b32.xlu0 %v1878, 16
      %v1904 = vpop.permute.xlu0 %1903
      %1905 = vrot.lane.b32.xlu0 %v1877, 16
      %v1906 = vpop.permute.xlu0 %1905
      %1907 = vrot.lane.b32.xlu0 %v1879, 16
      %v1908 = vpop.permute.xlu0 %1907
      %v1909 = vsel %vm312, %v1902, %v1906
      %v1910 = vsel %vm312, %v1904, %v1908
      %v1911 = vsel %vm312, %v1906, %v1902
      %v1912 = vsel %vm312, %v1908, %v1904
      %v1913 = vmul.f32 %v1911, %v318
      %v1914 = vmul.f32 %v1909, %v322
      %v1915 = vmul.f32 %v1912, %v318
      %v1916 = vmul.f32 %v1910, %v322
      %1917 = vrot.lane.b32.xlu0 %v1876, 15
      %v1918 = vpop.permute.xlu0 %1917
      %1919 = vrot.lane.b32.xlu0 %v1878, 15
      %v1920 = vpop.permute.xlu0 %1919
      %1921 = vrot.lane.b32.xlu0 %v1877, 15
      %v1922 = vpop.permute.xlu0 %1921
      %1923 = vrot.lane.b32.xlu0 %v1879, 15
      %v1924 = vpop.permute.xlu0 %1923
      %v1925 = vsel %vm329, %v1918, %v1922
      %v1926 = vsel %vm329, %v1920, %v1924
      %v1927 = vsel %vm329, %v1922, %v1918
      %v1928 = vsel %vm329, %v1924, %v1920
      %v1929 = vmul.f32 %v1927, %v335
      %v1930 = vmul.f32 %v1925, %v339
      %v1931 = vmul.f32 %v1928, %v335
      %v1932 = vmul.f32 %v1926, %v339
      %1933 = vrot.lane.b32.xlu0 %v1876, 1
      %v1934 = vpop.permute.xlu0 %1933
      %1935 = vrot.lane.b32.xlu0 %v1878, 1
      %v1936 = vpop.permute.xlu0 %1935
      %1937 = vrot.lane.b32.xlu0 %v1877, 1
      %v1938 = vpop.permute.xlu0 %1937
      %1939 = vrot.lane.b32.xlu0 %v1879, 1
      %v1940 = vpop.permute.xlu0 %1939
      %v1941 = vsel %vm346, %v1934, %v1938
      %v1942 = vsel %vm346, %v1936, %v1940
      %v1943 = vsel %vm346, %v1938, %v1934
      %v1944 = vsel %vm346, %v1940, %v1936
      %v1945 = vmul.f32 %v1943, %v352
      %v1946 = vmul.f32 %v1941, %v356
      %v1947 = vmul.f32 %v1944, %v352
      %v1948 = vmul.f32 %v1942, %v356
      %1949 = vrot.lane.b32.xlu0 %v1876, 127
      %v1950 = vpop.permute.xlu0 %1949
      %1951 = vrot.lane.b32.xlu0 %v1878, 127
      %v1952 = vpop.permute.xlu0 %1951
      %1953 = vrot.lane.b32.xlu0 %v1877, 127
      %v1954 = vpop.permute.xlu0 %1953
      %1955 = vrot.lane.b32.xlu0 %v1879, 127
      %v1956 = vpop.permute.xlu0 %1955
      %v1957 = vsel %vm363, %v1950, %v1954
      %v1958 = vsel %vm363, %v1952, %v1956
      %v1959 = vsel %vm363, %v1954, %v1950
      %v1960 = vsel %vm363, %v1956, %v1952
      %v1961 = vmul.f32 %v1957, %v369
      %v1962 = vmul.f32 %v1959, %v373
      %v1963 = vmul.f32 %v1958, %v369
      %v1964 = vmul.f32 %v1960, %v373
      %1965 = vrot.lane.b32.xlu0 %v1876, 113
      %v1966 = vpop.permute.xlu0 %1965
      %1967 = vrot.lane.b32.xlu0 %v1878, 113
      %v1968 = vpop.permute.xlu0 %1967
      %1969 = vrot.lane.b32.xlu0 %v1877, 113
      %v1970 = vpop.permute.xlu0 %1969
      %1971 = vrot.lane.b32.xlu0 %v1879, 113
      %v1972 = vpop.permute.xlu0 %1971
      %v1973 = vsel %vm380, %v1966, %v1970
      %v1974 = vsel %vm380, %v1968, %v1972
      %v1975 = vsel %vm380, %v1970, %v1966
      %v1976 = vsel %vm380, %v1972, %v1968
      %v1977 = vmul.f32 %v1973, %v386
      %v1978 = vmul.f32 %v1975, %v390
      %v1979 = vmul.f32 %v1974, %v386
      %v1980 = vmul.f32 %v1976, %v390
      %1981 = vrot.lane.b32.xlu0 %v1876, 112
      %v1982 = vpop.permute.xlu0 %1981
      %1983 = vrot.lane.b32.xlu0 %v1878, 112
      %v1984 = vpop.permute.xlu0 %1983
      %1985 = vrot.lane.b32.xlu0 %v1877, 112
      %v1986 = vpop.permute.xlu0 %1985
      %1987 = vrot.lane.b32.xlu0 %v1879, 112
      %v1988 = vpop.permute.xlu0 %1987
      %v1989 = vsel %vm397, %v1982, %v1986
      %v1990 = vsel %vm397, %v1984, %v1988
      %v1991 = vsel %vm397, %v1986, %v1982
      %v1992 = vsel %vm397, %v1988, %v1984
      %v1993 = vmul.f32 %v1989, %v403
      %v1994 = vmul.f32 %v1991, %v407
      %v1995 = vmul.f32 %v1990, %v403
      %v1996 = vmul.f32 %v1992, %v407
      %1997 = vrot.lane.b32.xlu0 %v1876, 111
      %v1998 = vpop.permute.xlu0 %1997
      %1999 = vrot.lane.b32.xlu0 %v1878, 111
      %v2000 = vpop.permute.xlu0 %1999
      %2001 = vrot.lane.b32.xlu0 %v1877, 111
      %v2002 = vpop.permute.xlu0 %2001
      %2003 = vrot.lane.b32.xlu0 %v1879, 111
      %v2004 = vpop.permute.xlu0 %2003
      %v2005 = vsel %vm414, %v1998, %v2002
      %v2006 = vsel %vm414, %v2000, %v2004
      %v2007 = vsel %vm414, %v2002, %v1998
      %v2008 = vsel %vm414, %v2004, %v2000
      %v2009 = vmul.f32 %v2005, %v420
      %v2010 = vmul.f32 %v2007, %v424
      %v2011 = vmul.f32 %v2006, %v420
      %v2012 = vmul.f32 %v2008, %v424
      %v2014 = vsel %vm1356, %v1882, 0
      %v2017 = vsel %vm1356, %v1884, 0
      %2019 = vmatprep.subr.mxu0 %v1996
      %2020 = vmatpush1.msra.mxu0 %v1995
      %2021 = vmatprep.subr.mxu0 %v1994
      %2022 = vmatpush1.msra.mxu0 %v1993
      %2023 = vmatprep.subr.mxu0 %v1980
      %2024 = vmatpush1.msra.mxu0 %v1979
      %2025 = vmatprep.subr.mxu0 %v1978
      %2026 = vmatpush1.msra.mxu0 %v1977
      %2027 = vmatprep.subr.mxu0 %v1964
      %2028 = vmatpush1.msra.mxu0 %v1963
      %2029 = vmatprep.subr.mxu0 %v1962
      %2030 = vmatpush1.msra.mxu0 %v1961
      %2031 = vmatprep.subr.mxu0 %v1879
      %2032 = vmatpush1.msra.mxu0 %v1878
      %2033 = vmatprep.subr.mxu0 %v1877
      %2034 = vmatpush1.msra.mxu0 %v1876
      %2035 = vmatprep.subr.mxu0 %v1948
      %2036 = vmatpush1.msra.mxu0 %v1947
      %2037 = vmatprep.subr.mxu0 %v1946
      %2038 = vmatpush1.msra.mxu0 %v1945
      %2039 = vmatprep.subr.mxu0 %v1932
      %2040 = vmatpush1.msra.mxu0 %v1931
      %2041 = vmatprep.subr.mxu0 %v1930
      %2042 = vmatpush1.msra.mxu0 %v1929
      %2043 = vmatprep.subr.mxu0 %v1916
      %2044 = vmatpush1.msra.mxu0 %v1915
      %2045 = vmatprep.subr.mxu0 %v1914
      %2046 = vmatpush1.msra.mxu0 %v1913
      %2047 = vmatprep.subr.mxu0 %v1900
      %2048 = vmatpush1.msra.mxu0 %v1899
      %2049 = vmatprep.subr.mxu0 %v1898
      %2050 = vmatpush1.msra.mxu0 %v1897
      %2051 = vmatprep.subr.mxu0 0.0
      %2052 = vmatpush2.msra.mxu0 0.0
      %2053 = vmatprep.subr.mxu0 0.0
      %2054 = vmatpush2.msra.mxu0 0.0
      %2055 = vmatprep.subr.mxu0 0.0
      %2056 = vmatpush2.msra.mxu0 0.0
      %2057 = vmatprep.subr.mxu0 0.0
      %2058 = vmatpush2.msra.mxu0 0.0
      %2059 = vmatprep.subr.mxu0 0.0
      %2060 = vmatpush2.msra.mxu0 0.0
      %2061 = vmatprep.subr.mxu0 0.0
      %2062 = vmatpush2.msra.mxu0 0.0
      %2063 = vmatprep.subr.mxu0 0.0
      %2064 = vmatpush2.msra.mxu0 0.0
      %2065 = vmatprep.subr.mxu0 0.0
      %2066 = vmatpush2.msra.mxu0 0.0
      %2067 = vmatprep.subr.mxu0 0.0
      %2068 = vmatpush2.msra.mxu0 0.0
      %2069 = vmatprep.subr.mxu0 0.0
      %2070 = vmatpush2.msra.mxu0 0.0
      %2071 = vmatprep.subr.mxu0 0.0
      %2072 = vmatpush2.msra.mxu0 0.0
      %2073 = vmatprep.subr.mxu0 0.0
      %2074 = vmatpush2.msra.mxu0 0.0
      %2075 = vmatprep.subr.mxu0 0.0
      %2076 = vmatpush2.msra.mxu0 0.0
      %2077 = vmatprep.subr.mxu0 %v433
      %2078 = vmatpush2.msra.mxu0 %v433
      %2079 = vmatprep.subr.mxu0 %v2012
      %2080 = vmatpush2.msra.mxu0 %v2011
      %2081 = vmatprep.subr.mxu0 %v2010
      %2082 = vmatpush2.msra.mxu0 %v2009
      %2083 = vmatprep.mubr.f32.mxu0 %v2014
      %2084 = vmatmul.mubr.f32.gmra.mxu0 %v1881
      %v2085 = vpop.f32.mrf.mxu0
      %v2086 = vadd.f32 %v1650, %v2085
      %v2087 = vpop.f32.mrf.mxu0
      %v2088 = vadd.f32 %v1652, %v2087
      %2089 = vmatprep.mubr.f32.mxu0 %v2017
      %2090 = vmatmul.mubr.f32.gmra.mxu0 %v1883
      %v2091 = vpop.f32.mrf.mxu0
      %v2092 = vadd.f32 %v1656, %v2091
      %v2093 = vpop.f32.mrf.mxu0
      %v2094 = vadd.f32 %v1658, %v2093
      %2095 = vdwg.mxu0
      %v2096 = vld [vmem:[%s6] sm:$0xff]
      %2097 = vrot.lane.b32.xlu0 %v2086, 17
      %v2098 = vpop.permute.xlu0 %2097
      %2099 = vrot.lane.b32.xlu0 %v2092, 17
      %v2100 = vpop.permute.xlu0 %2099
      %2101 = vrot.lane.b32.xlu0 %v2088, 17
      %v2102 = vpop.permute.xlu0 %2101
      %2103 = vrot.lane.b32.xlu0 %v2094, 17
      %v2104 = vpop.permute.xlu0 %2103
      %v2105 = vsel %vm295, %v2098, %v2102
      %v2106 = vsel %vm295, %v2100, %v2104
      %v2107 = vsel %vm295, %v2102, %v2098
      %v2108 = vsel %vm295, %v2104, %v2100
      %v2109 = vmul.f32 %v2107, %v301
      %v2110 = vmul.f32 %v2105, %v305
      %v2111 = vmul.f32 %v2108, %v301
      %v2112 = vmul.f32 %v2106, %v305
      %2113 = vrot.lane.b32.xlu0 %v2086, 16
      %v2114 = vpop.permute.xlu0 %2113
      %2115 = vrot.lane.b32.xlu0 %v2092, 16
      %v2116 = vpop.permute.xlu0 %2115
      %2117 = vrot.lane.b32.xlu0 %v2088, 16
      %v2118 = vpop.permute.xlu0 %2117
      %2119 = vrot.lane.b32.xlu0 %v2094, 16
      %v2120 = vpop.permute.xlu0 %2119
      %v2121 = vsel %vm312, %v2114, %v2118
      %v2122 = vsel %vm312, %v2116, %v2120
      %v2123 = vsel %vm312, %v2118, %v2114
      %v2124 = vsel %vm312, %v2120, %v2116
      %v2125 = vmul.f32 %v2123, %v318
      %v2126 = vmul.f32 %v2121, %v322
      %v2127 = vmul.f32 %v2124, %v318
      %v2128 = vmul.f32 %v2122, %v322
      %2129 = vrot.lane.b32.xlu0 %v2086, 15
      %v2130 = vpop.permute.xlu0 %2129
      %2131 = vrot.lane.b32.xlu0 %v2092, 15
      %v2132 = vpop.permute.xlu0 %2131
      %2133 = vrot.lane.b32.xlu0 %v2088, 15
      %v2134 = vpop.permute.xlu0 %2133
      %2135 = vrot.lane.b32.xlu0 %v2094, 15
      %v2136 = vpop.permute.xlu0 %2135
      %v2137 = vsel %vm329, %v2130, %v2134
      %v2138 = vsel %vm329, %v2132, %v2136
      %v2139 = vsel %vm329, %v2134, %v2130
      %v2140 = vsel %vm329, %v2136, %v2132
      %v2141 = vmul.f32 %v2139, %v335
      %v2142 = vmul.f32 %v2137, %v339
      %v2143 = vmul.f32 %v2140, %v335
      %v2144 = vmul.f32 %v2138, %v339
      %2145 = vrot.lane.b32.xlu0 %v2086, 1
      %v2146 = vpop.permute.xlu0 %2145
      %2147 = vrot.lane.b32.xlu0 %v2092, 1
      %v2148 = vpop.permute.xlu0 %2147
      %2149 = vrot.lane.b32.xlu0 %v2088, 1
      %v2150 = vpop.permute.xlu0 %2149
      %2151 = vrot.lane.b32.xlu0 %v2094, 1
      %v2152 = vpop.permute.xlu0 %2151
      %v2153 = vsel %vm346, %v2146, %v2150
      %v2154 = vsel %vm346, %v2148, %v2152
      %v2155 = vsel %vm346, %v2150, %v2146
      %v2156 = vsel %vm346, %v2152, %v2148
      %v2157 = vmul.f32 %v2155, %v352
      %v2158 = vmul.f32 %v2153, %v356
      %v2159 = vmul.f32 %v2156, %v352
      %v2160 = vmul.f32 %v2154, %v356
      %2161 = vrot.lane.b32.xlu0 %v2086, 127
      %v2162 = vpop.permute.xlu0 %2161
      %2163 = vrot.lane.b32.xlu0 %v2092, 127
      %v2164 = vpop.permute.xlu0 %2163
      %2165 = vrot.lane.b32.xlu0 %v2088, 127
      %v2166 = vpop.permute.xlu0 %2165
      %2167 = vrot.lane.b32.xlu0 %v2094, 127
      %v2168 = vpop.permute.xlu0 %2167
      %v2169 = vsel %vm363, %v2162, %v2166
      %v2170 = vsel %vm363, %v2164, %v2168
      %v2171 = vsel %vm363, %v2166, %v2162
      %v2172 = vsel %vm363, %v2168, %v2164
      %v2173 = vmul.f32 %v2169, %v369
      %v2174 = vmul.f32 %v2171, %v373
      %v2175 = vmul.f32 %v2170, %v369
      %v2176 = vmul.f32 %v2172, %v373
      %2177 = vrot.lane.b32.xlu0 %v2086, 113
      %v2178 = vpop.permute.xlu0 %2177
      %2179 = vrot.lane.b32.xlu0 %v2092, 113
      %v2180 = vpop.permute.xlu0 %2179
      %2181 = vrot.lane.b32.xlu0 %v2088, 113
      %v2182 = vpop.permute.xlu0 %2181
      %2183 = vrot.lane.b32.xlu0 %v2094, 113
      %v2184 = vpop.permute.xlu0 %2183
      %v2185 = vsel %vm380, %v2178, %v2182
      %v2186 = vsel %vm380, %v2180, %v2184
      %v2187 = vsel %vm380, %v2182, %v2178
      %v2188 = vsel %vm380, %v2184, %v2180
      %v2189 = vmul.f32 %v2185, %v386
      %v2190 = vmul.f32 %v2187, %v390
      %v2191 = vmul.f32 %v2186, %v386
      %v2192 = vmul.f32 %v2188, %v390
      %2193 = vrot.lane.b32.xlu0 %v2086, 112
      %v2194 = vpop.permute.xlu0 %2193
      %2195 = vrot.lane.b32.xlu0 %v2092, 112
      %v2196 = vpop.permute.xlu0 %2195
      %2197 = vrot.lane.b32.xlu0 %v2088, 112
      %v2198 = vpop.permute.xlu0 %2197
      %2199 = vrot.lane.b32.xlu0 %v2094, 112
      %v2200 = vpop.permute.xlu0 %2199
      %v2201 = vsel %vm397, %v2194, %v2198
      %v2202 = vsel %vm397, %v2196, %v2200
      %v2203 = vsel %vm397, %v2198, %v2194
      %v2204 = vsel %vm397, %v2200, %v2196
      %v2205 = vmul.f32 %v2201, %v403
      %v2206 = vmul.f32 %v2203, %v407
      %v2207 = vmul.f32 %v2202, %v403
      %v2208 = vmul.f32 %v2204, %v407
      %2209 = vrot.lane.b32.xlu0 %v2086, 111
      %v2210 = vpop.permute.xlu0 %2209
      %2211 = vrot.lane.b32.xlu0 %v2092, 111
      %v2212 = vpop.permute.xlu0 %2211
      %2213 = vrot.lane.b32.xlu0 %v2088, 111
      %v2214 = vpop.permute.xlu0 %2213
      %2215 = vrot.lane.b32.xlu0 %v2094, 111
      %v2216 = vpop.permute.xlu0 %2215
      %v2217 = vsel %vm414, %v2210, %v2214
      %v2218 = vsel %vm414, %v2212, %v2216
      %v2219 = vsel %vm414, %v2214, %v2210
      %v2220 = vsel %vm414, %v2216, %v2212
      %v2221 = vmul.f32 %v2217, %v420
      %v2222 = vmul.f32 %v2219, %v424
      %v2223 = vmul.f32 %v2218, %v420
      %v2224 = vmul.f32 %v2220, %v424
      %v2226 = vcombine.high %v2096, %v2096
      %v2227 = vsel %vm1356, %v2226, 0
      %2229 = vmatprep.subr.mxu0 %v2208
      %2230 = vmatpush1.msra.mxu0 %v2207
      %2231 = vmatprep.subr.mxu0 %v2206
      %2232 = vmatpush1.msra.mxu0 %v2205
      %2233 = vmatprep.subr.mxu0 %v2192
      %2234 = vmatpush1.msra.mxu0 %v2191
      %2235 = vmatprep.subr.mxu0 %v2190
      %2236 = vmatpush1.msra.mxu0 %v2189
      %2237 = vmatprep.subr.mxu0 %v2176
      %2238 = vmatpush1.msra.mxu0 %v2175
      %2239 = vmatprep.subr.mxu0 %v2174
      %2240 = vmatpush1.msra.mxu0 %v2173
      %2241 = vmatprep.subr.mxu0 %v2094
      %2242 = vmatpush1.msra.mxu0 %v2092
      %2243 = vmatprep.subr.mxu0 %v2088
      %2244 = vmatpush1.msra.mxu0 %v2086
      %2245 = vmatprep.subr.mxu0 %v2160
      %2246 = vmatpush1.msra.mxu0 %v2159
      %2247 = vmatprep.subr.mxu0 %v2158
      %2248 = vmatpush1.msra.mxu0 %v2157
      %2249 = vmatprep.subr.mxu0 %v2144
      %2250 = vmatpush1.msra.mxu0 %v2143
      %2251 = vmatprep.subr.mxu0 %v2142
      %2252 = vmatpush1.msra.mxu0 %v2141
      %2253 = vmatprep.subr.mxu0 %v2128
      %2254 = vmatpush1.msra.mxu0 %v2127
      %2255 = vmatprep.subr.mxu0 %v2126
      %2256 = vmatpush1.msra.mxu0 %v2125
      %2257 = vmatprep.subr.mxu0 %v2112
      %2258 = vmatpush1.msra.mxu0 %v2111
      %2259 = vmatprep.subr.mxu0 %v2110
      %2260 = vmatpush1.msra.mxu0 %v2109
      %2261 = vmatprep.subr.mxu0 0.0
      %2262 = vmatpush2.msra.mxu0 0.0
      %2263 = vmatprep.subr.mxu0 0.0
      %2264 = vmatpush2.msra.mxu0 0.0
      %2265 = vmatprep.subr.mxu0 0.0
      %2266 = vmatpush2.msra.mxu0 0.0
      %2267 = vmatprep.subr.mxu0 0.0
      %2268 = vmatpush2.msra.mxu0 0.0
      %2269 = vmatprep.subr.mxu0 0.0
      %2270 = vmatpush2.msra.mxu0 0.0
      %2271 = vmatprep.subr.mxu0 0.0
      %2272 = vmatpush2.msra.mxu0 0.0
      %2273 = vmatprep.subr.mxu0 0.0
      %2274 = vmatpush2.msra.mxu0 0.0
      %2275 = vmatprep.subr.mxu0 0.0
      %2276 = vmatpush2.msra.mxu0 0.0
      %2277 = vmatprep.subr.mxu0 0.0
      %2278 = vmatpush2.msra.mxu0 0.0
      %2279 = vmatprep.subr.mxu0 0.0
      %2280 = vmatpush2.msra.mxu0 0.0
      %2281 = vmatprep.subr.mxu0 0.0
      %2282 = vmatpush2.msra.mxu0 0.0
      %2283 = vmatprep.subr.mxu0 0.0
      %2284 = vmatpush2.msra.mxu0 0.0
      %2285 = vmatprep.subr.mxu0 0.0
      %2286 = vmatpush2.msra.mxu0 0.0
      %2287 = vmatprep.subr.mxu0 %v433
      %2288 = vmatpush2.msra.mxu0 %v433
      %2289 = vmatprep.subr.mxu0 %v2224
      %2290 = vmatpush2.msra.mxu0 %v2223
      %2291 = vmatprep.subr.mxu0 %v2222
      %2292 = vmatpush2.msra.mxu0 %v2221
      %2293 = vmatprep.mubr.f32.mxu0 %v2227
      %2294 = vmatmul.mubr.f32.gmra.mxu0 %v2096
      %v2295 = vpop.f32.mrf.mxu0
      %v2296 = vadd.f32 0.0, %v2295
      %v2297 = vpop.f32.mrf.mxu0
      %v2298 = vadd.f32 0.0, %v2297
      %2299 = vdwg.mxu0
      %v2302 = vcombine.low %v2296, %v2298
      %2304 = vst [vmem:[%s280] sm:$0xff] %v2302
      %s2305 = smul.u32 2, %s18
      %p2306 = scmp.lt.s32.totalorder %s2305, 3
      %s2307 = scalar_select %p2306, %s2305, 3
      %s2308 = smul.addr %s2307, 4
      %s2309 = scalar_lea.vmem %s7, %s2308
      // Predicated region
      $region49: #{_lambda_.1} parent=47 // pred_check
        %p2310 = pneg %p188
      $region50: #{_lambda_.1} parent=47 // pred_check_branch
        %2312 = sbr.rel (%p2310) target = $region52
      $region51: #{_lambda_.1} parent=47 // pred_region
        %s2313 = smul.u32 2, %s18
      $region52: #{_lambda_.1} parent=47 // pred_fallthru
        _
    $region48: #{_lambda_.1} parent=5 // pred_fallthru
      _
    %p2314 = scmp.le.s32.totalorder 2, %s13
    // Predicated region
    $region53: #{_lambda_.1} parent=5 // pred_check
      %p2315 = pneg %p2314
    $region54: #{_lambda_.1} parent=5 // pred_check_branch
      %2317 = sbr.rel (%p2315) target = $region56
    $region55: #{_lambda_.1} parent=5 // pred_region
      %s2318 = ssub.s32 %s13, 2
      // Predicated region
      $region57: #{_lambda_.1} parent=55 // pred_check
        %p2319 = pneg %p194
      $region58: #{_lambda_.1} parent=55 // pred_check_branch
        %2321 = sbr.rel (%p2319) target = $region60
      $region59: #{_lambda_.1} parent=55 // pred_region
        %s2322 = smul.u32 2, %s19
        %p2323 = scmp.lt.s32.totalorder %s2322, 3
        %s2324 = scalar_select %p2323, %s2322, 3
        %s2325 = smul.addr %s2324, 4
        %s2326 = scalar_lea.vmem %s7, %s2325
      $region60: #{_lambda_.1} parent=55 // pred_fallthru
        _
    $region56: #{_lambda_.1} parent=5 // pred_fallthru
      _
  $region6: #{_lambda_.1} parent=0 // loop_footer
    %s17 = sadd.s32 1, %s13
  $region7: #{_lambda_.1} parent=0 // loop_footer_branch
    %12 = sbr.rel target = $region3
  $region8: #{_lambda_.1} parent=0 // loop_exit
    _

</llo_original>
